<compile_context>
chip_gen: v7x
topology: tpu7x:2x2x1
jax: 0.10.0
libtpu: 0.0.40
codegen_flags: <defaults>
</compile_context>

<pallas_src>
import functools
import math

import jax
import jax.numpy as jnp
from jax import lax
from jax.experimental import pallas as pl
from jax.experimental.pallas import tpu as pltpu

_LN_EPS = 1e-5
_VMEM = pl.BlockSpec(memory_space=pltpu.MemorySpace.VMEM)


# ------------------------------ Pallas kernel --------------------------------
def _encoder_fre_kernel(x_ref, wq_ref, wk_ref, wv_ref, wo_ref,
                        bq_ref, bk_ref, bv_ref, bo_ref,
                        pool_ref, expand_ref, lnavg_ref,
                        gamma_ref, beta_ref, o_ref,
                        *, n_layers, seq_l, scale):
    """n_layers x (MultiheadAttention -> shared LayerNorm) on an (L, F) slab.

    Columns are grouped as F = n_group * d_model; attention mixes rows (the
    L = batch axis) independently inside every (group, head) column block.
    """
    x = x_ref[...].astype(jnp.float32)       # (L, F)
    pool = pool_ref[...]                     # (F, G*H)  column -> head-slot sum
    expand = expand_ref[...]                 # (G*H, F)  head-slot -> columns
    lnavg = lnavg_ref[...]                   # (F, F)    per-group averaging
    gamma = gamma_ref[...]                   # (1, F)
    beta = beta_ref[...]                     # (1, F)

    for layer in range(n_layers):            # static unroll (tiny)
        q = jnp.dot(x, wq_ref[layer], preferred_element_type=jnp.float32) + bq_ref[layer]
        k = jnp.dot(x, wk_ref[layer], preferred_element_type=jnp.float32) + bk_ref[layer]
        v = jnp.dot(x, wv_ref[layer], preferred_element_type=jnp.float32) + bv_ref[layer]

        # scores s[j]: (L, G*H) -- query row i vs key row j, per (group, head)
        s = [jnp.dot(q * k[j:j + 1, :], pool,
                     preferred_element_type=jnp.float32) * scale
             for j in range(seq_l)]

        # numerically stable softmax over the key index j
        m = s[0]
        for j in range(1, seq_l):
            m = jnp.maximum(m, s[j])
        e = [jnp.exp(sj - m) for sj in s]
        denom = e[0]
        for j in range(1, seq_l):
            denom = denom + e[j]
        inv = 1.0 / denom                    # exact divide; workload is launch-bound

        # attention output: out[i, col] = sum_j p[i, head(col), j] * v[j, col]
        attn = jnp.zeros_like(x)
        for j in range(seq_l):
            p_cols = jnp.dot(e[j] * inv, expand,
                             preferred_element_type=jnp.float32)     # (L, F)
            attn = attn + p_cols * v[j:j + 1, :]

        o = jnp.dot(attn, wo_ref[layer],
                    preferred_element_type=jnp.float32) + bo_ref[layer]

        # shared LayerNorm over every d_model-sized column block
        mu = jnp.dot(o, lnavg, preferred_element_type=jnp.float32)
        d = o - mu
        var = jnp.dot(d * d, lnavg, preferred_element_type=jnp.float32)
        x = d * lax.rsqrt(var + _LN_EPS) * gamma + beta

    o_ref[...] = x.astype(o_ref.dtype)


# ------------------------------ Pallas wrapper --------------------------------
@functools.partial(jax.jit, static_argnames=("d_model", "nhead"))
def tune_encoder_fre(x, kparams, *, d_model, nhead):
    """x: (batch, feature_dim) -> (batch, feature_dim)."""
    bsz, feat = x.shape
    n_layers = kparams["wq"].shape[0]
    scale = 1.0 / math.sqrt(d_model // nhead)
    kernel = functools.partial(_encoder_fre_kernel,
                               n_layers=n_layers, seq_l=bsz, scale=scale)
    return pl.pallas_call(
        kernel,
        out_shape=jax.ShapeDtypeStruct((bsz, feat), jnp.float32),
        in_specs=[_VMEM] * 14,
        out_specs=_VMEM,
    )(x, kparams["wq"], kparams["wk"], kparams["wv"], kparams["wo"],
      kparams["bq"], kparams["bk"], kparams["bv"], kparams["bo"],
      kparams["pool"], kparams["expand"], kparams["lnavg"],
      kparams["gamma"], kparams["beta"])


# ------------------------- parameter init / packing ---------------------------
def init_raw_params(key, d_model, n_layers):
    """PyTorch-layout parameters for TuneEncoderFre (deterministic)."""
    layers = []
    s = 1.0 / math.sqrt(d_model)
    for lk in jax.random.split(key, n_layers):
        k1, k2, k3, k4 = jax.random.split(lk, 4)
        layers.append(dict(
            in_w=jax.random.normal(k1, (3 * d_model, d_model), jnp.float32) * s,
            in_b=jax.random.normal(k2, (3 * d_model,), jnp.float32) * 0.02,
            out_w=jax.random.normal(k3, (d_model, d_model), jnp.float32) * s,
            out_b=jax.random.normal(k4, (d_model,), jnp.float32) * 0.02,
        ))
    return dict(layers=layers,
                gamma=jnp.ones((d_model,), jnp.float32),
                beta=jnp.zeros((d_model,), jnp.float32))


def prepare_kernel_params(raw, feature_dim, d_model, nhead):
    """One-time re-pack of PyTorch weights into lane-dense kernel operands."""
    e = d_model
    n_group = feature_dim // e
    head_d = e // nhead
    eye = jnp.eye(n_group, dtype=jnp.float32)

    def blockdiag(w_t):                       # (E, E) -> (F, F) block-diagonal
        return jnp.kron(eye, w_t)

    def tiled(b):                             # (E,) -> (1, F)
        return jnp.tile(b, n_group)[None, :]

    wq, wk, wv, wo, bq, bk, bv, bo = ([] for _ in range(8))
    for layer in raw["layers"]:
        in_w, in_b = layer["in_w"], layer["in_b"]
        wq.append(blockdiag(in_w[:e].T))
        wk.append(blockdiag(in_w[e:2 * e].T))
        wv.append(blockdiag(in_w[2 * e:].T))
        wo.append(blockdiag(layer["out_w"].T))
        bq.append(tiled(in_b[:e]))
        bk.append(tiled(in_b[e:2 * e]))
        bv.append(tiled(in_b[2 * e:]))
        bo.append(tiled(layer["out_b"]))

    head_id = jnp.arange(feature_dim) // head_d        # column -> (group, head) slot
    pool = (head_id[:, None] ==
            jnp.arange(n_group * nhead)[None, :]).astype(jnp.float32)
    lnavg = jnp.kron(eye, jnp.full((e, e), 1.0 / e, jnp.float32))

    return dict(
        wq=jnp.stack(wq), wk=jnp.stack(wk), wv=jnp.stack(wv), wo=jnp.stack(wo),
        bq=jnp.stack(bq), bk=jnp.stack(bk), bv=jnp.stack(bv), bo=jnp.stack(bo),
        pool=pool, expand=pool.T, lnavg=lnavg,
        gamma=tiled(raw["gamma"]), beta=tiled(raw["beta"]),
    )


# --------------------------- pure-JAX reference -------------------------------
def encoder_fre_ref(x2d, raw, d_model, nhead):
    """Pure-JAX mirror of the PyTorch forward (eval mode)."""
    bsz, feat = x2d.shape
    e = d_model
    head_d = e // nhead
    hp = lax.Precision.HIGHEST
    x = x2d.reshape(bsz, feat // e, e)        # (L=batch, N=groups, E)
    for layer in raw["layers"]:
        qkv = jnp.einsum("lne,fe->lnf", x, layer["in_w"], precision=hp) + layer["in_b"]
        q, k, v = qkv[..., :e], qkv[..., e:2 * e], qkv[..., 2 * e:]
        ln, n, _ = q.shape
        q = q.reshape(ln, n, nhead, head_d)
        k = k.reshape(ln, n, nhead, head_d)
        v = v.reshape(ln, n, nhead, head_d)
        s = jnp.einsum("inhd,jnhd->nhij", q, k, precision=hp) / math.sqrt(head_d)
        p = jax.nn.softmax(s, axis=-1)
        o = jnp.einsum("nhij,jnhd->inhd", p, v, precision=hp).reshape(ln, n, e)
        o = jnp.einsum("lne,fe->lnf", o, layer["out_w"], precision=hp) + layer["out_b"]
        mu = o.mean(-1, keepdims=True)
        var = ((o - mu) ** 2).mean(-1, keepdims=True)
        x = (o - mu) / jnp.sqrt(var + _LN_EPS) * raw["gamma"] + raw["beta"]
    return x.reshape(bsz, feat)               # dropout == identity (eval)


# ----------------------------------- main --------------------------------------
if __name__ == "__main__":
    D_MODEL, NHEAD, N_LAYERS = 8, 2, 2
    BATCH, FEATURE_DIM = 2, 32                # feature_dim % d_model == 0

    key = jax.random.PRNGKey(0)
    k_params, k_x = jax.random.split(key)
    raw = init_raw_params(k_params, D_MODEL, N_LAYERS)
    kparams = prepare_kernel_params(raw, FEATURE_DIM, D_MODEL, NHEAD)
    x = jax.random.normal(k_x, (BATCH, FEATURE_DIM), jnp.float32)

    out = tune_encoder_fre(x, kparams, d_model=D_MODEL, nhead=NHEAD)
    out = jax.block_until_ready(out)

    assert out.shape == (BATCH, FEATURE_DIM), out.shape
    assert bool(jnp.isfinite(out).all())
    ref = encoder_fre_ref(x, raw, D_MODEL, NHEAD)
    err = float(jnp.max(jnp.abs(out - ref)))
    assert err < 1e-2, f"max abs err {err}"
    print("KERNEL_OK")
</pallas_src>

<mosaic_0001>
module attributes {stable_mosaic.version = 11 : i64} {
  func.func @_encoder_fre_kernel(%arg0: memref<2x32xf32, #tpu.memory_space<vmem>>, %arg1: memref<2x32x32xf32, #tpu.memory_space<vmem>>, %arg2: memref<2x32x32xf32, #tpu.memory_space<vmem>>, %arg3: memref<2x32x32xf32, #tpu.memory_space<vmem>>, %arg4: memref<2x32x32xf32, #tpu.memory_space<vmem>>, %arg5: memref<2x1x32xf32, #tpu.memory_space<vmem>>, %arg6: memref<2x1x32xf32, #tpu.memory_space<vmem>>, %arg7: memref<2x1x32xf32, #tpu.memory_space<vmem>>, %arg8: memref<2x1x32xf32, #tpu.memory_space<vmem>>, %arg9: memref<32x8xf32, #tpu.memory_space<vmem>>, %arg10: memref<8x32xf32, #tpu.memory_space<vmem>>, %arg11: memref<32x32xf32, #tpu.memory_space<vmem>>, %arg12: memref<1x32xf32, #tpu.memory_space<vmem>>, %arg13: memref<1x32xf32, #tpu.memory_space<vmem>>, %arg14: memref<2x32xf32, #tpu.memory_space<vmem>>) attributes {dimension_semantics = [], scalar_prefetch = 0 : i64, scratch_operands = 0 : i64, tpu.core_type = #tpu.core_type<tc>} {
    %c0 = arith.constant 0 : index
    %c0_0 = arith.constant 0 : index
    %0 = vector.load %arg0[%c0, %c0_0] : memref<2x32xf32, #tpu.memory_space<vmem>>, vector<2x32xf32>
    %c0_1 = arith.constant 0 : index
    %c0_2 = arith.constant 0 : index
    %1 = vector.load %arg9[%c0_1, %c0_2] : memref<32x8xf32, #tpu.memory_space<vmem>>, vector<32x8xf32>
    %c0_3 = arith.constant 0 : index
    %c0_4 = arith.constant 0 : index
    %2 = vector.load %arg10[%c0_3, %c0_4] : memref<8x32xf32, #tpu.memory_space<vmem>>, vector<8x32xf32>
    %c0_5 = arith.constant 0 : index
    %c0_6 = arith.constant 0 : index
    %3 = vector.load %arg11[%c0_5, %c0_6] : memref<32x32xf32, #tpu.memory_space<vmem>>, vector<32x32xf32>
    %c0_7 = arith.constant 0 : index
    %c0_8 = arith.constant 0 : index
    %4 = vector.load %arg12[%c0_7, %c0_8] : memref<1x32xf32, #tpu.memory_space<vmem>>, vector<1x32xf32>
    %c0_9 = arith.constant 0 : index
    %c0_10 = arith.constant 0 : index
    %5 = vector.load %arg13[%c0_9, %c0_10] : memref<1x32xf32, #tpu.memory_space<vmem>>, vector<1x32xf32>
    %c0_11 = arith.constant 0 : index
    %c0_12 = arith.constant 0 : index
    %c0_13 = arith.constant 0 : index
    %6 = vector.load %arg1[%c0_11, %c0_12, %c0_13] : memref<2x32x32xf32, #tpu.memory_space<vmem>>, vector<1x32x32xf32>
    %7 = vector.shape_cast %6 : vector<1x32x32xf32> to vector<32x32xf32>
    %cst = arith.constant dense<0.000000e+00> : vector<2x32xf32>
    %8 = tpu.matmul %0, %7, %cst {dimension_numbers = #tpu.dot_dimension_numbers<[1], [0], [0], [1], [0, 0, 1, 1], [], []>} : vector<2x32xf32>, vector<32x32xf32>, vector<2x32xf32> -> vector<2x32xf32>
    %c0_14 = arith.constant 0 : index
    %c0_15 = arith.constant 0 : index
    %c0_16 = arith.constant 0 : index
    %9 = vector.load %arg5[%c0_14, %c0_15, %c0_16] : memref<2x1x32xf32, #tpu.memory_space<vmem>>, vector<1x1x32xf32>
    %10 = vector.shape_cast %9 : vector<1x1x32xf32> to vector<1x32xf32>
    %11 = vector.broadcast %10 : vector<1x32xf32> to vector<2x32xf32>
    %12 = arith.addf %8, %11 : vector<2x32xf32>
    %c0_17 = arith.constant 0 : index
    %c0_18 = arith.constant 0 : index
    %c0_19 = arith.constant 0 : index
    %13 = vector.load %arg2[%c0_17, %c0_18, %c0_19] : memref<2x32x32xf32, #tpu.memory_space<vmem>>, vector<1x32x32xf32>
    %14 = vector.shape_cast %13 : vector<1x32x32xf32> to vector<32x32xf32>
    %cst_20 = arith.constant dense<0.000000e+00> : vector<2x32xf32>
    %15 = tpu.matmul %0, %14, %cst_20 {dimension_numbers = #tpu.dot_dimension_numbers<[1], [0], [0], [1], [0, 0, 1, 1], [], []>} : vector<2x32xf32>, vector<32x32xf32>, vector<2x32xf32> -> vector<2x32xf32>
    %c0_21 = arith.constant 0 : index
    %c0_22 = arith.constant 0 : index
    %c0_23 = arith.constant 0 : index
    %16 = vector.load %arg6[%c0_21, %c0_22, %c0_23] : memref<2x1x32xf32, #tpu.memory_space<vmem>>, vector<1x1x32xf32>
    %17 = vector.shape_cast %16 : vector<1x1x32xf32> to vector<1x32xf32>
    %18 = vector.broadcast %17 : vector<1x32xf32> to vector<2x32xf32>
    %19 = arith.addf %15, %18 : vector<2x32xf32>
    %c0_24 = arith.constant 0 : index
    %c0_25 = arith.constant 0 : index
    %c0_26 = arith.constant 0 : index
    %20 = vector.load %arg3[%c0_24, %c0_25, %c0_26] : memref<2x32x32xf32, #tpu.memory_space<vmem>>, vector<1x32x32xf32>
    %21 = vector.shape_cast %20 : vector<1x32x32xf32> to vector<32x32xf32>
    %cst_27 = arith.constant dense<0.000000e+00> : vector<2x32xf32>
    %22 = tpu.matmul %0, %21, %cst_27 {dimension_numbers = #tpu.dot_dimension_numbers<[1], [0], [0], [1], [0, 0, 1, 1], [], []>} : vector<2x32xf32>, vector<32x32xf32>, vector<2x32xf32> -> vector<2x32xf32>
    %c0_28 = arith.constant 0 : index
    %c0_29 = arith.constant 0 : index
    %c0_30 = arith.constant 0 : index
    %23 = vector.load %arg7[%c0_28, %c0_29, %c0_30] : memref<2x1x32xf32, #tpu.memory_space<vmem>>, vector<1x1x32xf32>
    %24 = vector.shape_cast %23 : vector<1x1x32xf32> to vector<1x32xf32>
    %25 = vector.broadcast %24 : vector<1x32xf32> to vector<2x32xf32>
    %26 = arith.addf %22, %25 : vector<2x32xf32>
    %27 = vector.extract_strided_slice %19 {offsets = [0, 0], sizes = [1, 32], strides = [1, 1]} : vector<2x32xf32> to vector<1x32xf32>
    %28 = vector.broadcast %27 : vector<1x32xf32> to vector<2x32xf32>
    %29 = arith.mulf %12, %28 : vector<2x32xf32>
    %cst_31 = arith.constant dense<0.000000e+00> : vector<2x8xf32>
    %30 = tpu.matmul %29, %1, %cst_31 {dimension_numbers = #tpu.dot_dimension_numbers<[1], [0], [0], [1], [0, 0, 1, 1], [], []>} : vector<2x32xf32>, vector<32x8xf32>, vector<2x8xf32> -> vector<2x8xf32>
    %cst_32 = arith.constant 5.000000e-01 : f32
    %31 = vector.broadcast %cst_32 : f32 to vector<2x8xf32>
    %32 = arith.mulf %30, %31 : vector<2x8xf32>
    %33 = vector.extract_strided_slice %19 {offsets = [1, 0], sizes = [1, 32], strides = [1, 1]} : vector<2x32xf32> to vector<1x32xf32>
    %34 = vector.broadcast %33 : vector<1x32xf32> to vector<2x32xf32>
    %35 = arith.mulf %12, %34 : vector<2x32xf32>
    %cst_33 = arith.constant dense<0.000000e+00> : vector<2x8xf32>
    %36 = tpu.matmul %35, %1, %cst_33 {dimension_numbers = #tpu.dot_dimension_numbers<[1], [0], [0], [1], [0, 0, 1, 1], [], []>} : vector<2x32xf32>, vector<32x8xf32>, vector<2x8xf32> -> vector<2x8xf32>
    %cst_34 = arith.constant 5.000000e-01 : f32
    %37 = vector.broadcast %cst_34 : f32 to vector<2x8xf32>
    %38 = arith.mulf %36, %37 : vector<2x8xf32>
    %39 = arith.maximumf %32, %38 : vector<2x8xf32>
    %40 = arith.subf %32, %39 : vector<2x8xf32>
    %41 = math.exp %40 : vector<2x8xf32>
    %42 = arith.subf %38, %39 : vector<2x8xf32>
    %43 = math.exp %42 : vector<2x8xf32>
    %44 = arith.addf %41, %43 : vector<2x8xf32>
    %cst_35 = arith.constant 1.000000e+00 : f32
    %45 = vector.broadcast %cst_35 : f32 to vector<2x8xf32>
    %46 = arith.divf %45, %44 : vector<2x8xf32>
    %cst_36 = arith.constant 0.000000e+00 : f32
    %47 = vector.broadcast %cst_36 : f32 to vector<2x32xf32>
    %48 = arith.mulf %41, %46 : vector<2x8xf32>
    %cst_37 = arith.constant dense<0.000000e+00> : vector<2x32xf32>
    %49 = tpu.matmul %48, %2, %cst_37 {dimension_numbers = #tpu.dot_dimension_numbers<[1], [0], [0], [1], [0, 0, 1, 1], [], []>} : vector<2x8xf32>, vector<8x32xf32>, vector<2x32xf32> -> vector<2x32xf32>
    %50 = vector.extract_strided_slice %26 {offsets = [0, 0], sizes = [1, 32], strides = [1, 1]} : vector<2x32xf32> to vector<1x32xf32>
    %51 = vector.broadcast %50 : vector<1x32xf32> to vector<2x32xf32>
    %52 = arith.mulf %49, %51 : vector<2x32xf32>
    %53 = arith.addf %47, %52 : vector<2x32xf32>
    %54 = arith.mulf %43, %46 : vector<2x8xf32>
    %cst_38 = arith.constant dense<0.000000e+00> : vector<2x32xf32>
    %55 = tpu.matmul %54, %2, %cst_38 {dimension_numbers = #tpu.dot_dimension_numbers<[1], [0], [0], [1], [0, 0, 1, 1], [], []>} : vector<2x8xf32>, vector<8x32xf32>, vector<2x32xf32> -> vector<2x32xf32>
    %56 = vector.extract_strided_slice %26 {offsets = [1, 0], sizes = [1, 32], strides = [1, 1]} : vector<2x32xf32> to vector<1x32xf32>
    %57 = vector.broadcast %56 : vector<1x32xf32> to vector<2x32xf32>
    %58 = arith.mulf %55, %57 : vector<2x32xf32>
    %59 = arith.addf %53, %58 : vector<2x32xf32>
    %c0_39 = arith.constant 0 : index
    %c0_40 = arith.constant 0 : index
    %c0_41 = arith.constant 0 : index
    %60 = vector.load %arg4[%c0_39, %c0_40, %c0_41] : memref<2x32x32xf32, #tpu.memory_space<vmem>>, vector<1x32x32xf32>
    %61 = vector.shape_cast %60 : vector<1x32x32xf32> to vector<32x32xf32>
    %cst_42 = arith.constant dense<0.000000e+00> : vector<2x32xf32>
    %62 = tpu.matmul %59, %61, %cst_42 {dimension_numbers = #tpu.dot_dimension_numbers<[1], [0], [0], [1], [0, 0, 1, 1], [], []>} : vector<2x32xf32>, vector<32x32xf32>, vector<2x32xf32> -> vector<2x32xf32>
    %c0_43 = arith.constant 0 : index
    %c0_44 = arith.constant 0 : index
    %c0_45 = arith.constant 0 : index
    %63 = vector.load %arg8[%c0_43, %c0_44, %c0_45] : memref<2x1x32xf32, #tpu.memory_space<vmem>>, vector<1x1x32xf32>
    %64 = vector.shape_cast %63 : vector<1x1x32xf32> to vector<1x32xf32>
    %65 = vector.broadcast %64 : vector<1x32xf32> to vector<2x32xf32>
    %66 = arith.addf %62, %65 : vector<2x32xf32>
    %cst_46 = arith.constant dense<0.000000e+00> : vector<2x32xf32>
    %67 = tpu.matmul %66, %3, %cst_46 {dimension_numbers = #tpu.dot_dimension_numbers<[1], [0], [0], [1], [0, 0, 1, 1], [], []>} : vector<2x32xf32>, vector<32x32xf32>, vector<2x32xf32> -> vector<2x32xf32>
    %68 = arith.subf %66, %67 : vector<2x32xf32>
    %69 = arith.mulf %68, %68 : vector<2x32xf32>
    %cst_47 = arith.constant dense<0.000000e+00> : vector<2x32xf32>
    %70 = tpu.matmul %69, %3, %cst_47 {dimension_numbers = #tpu.dot_dimension_numbers<[1], [0], [0], [1], [0, 0, 1, 1], [], []>} : vector<2x32xf32>, vector<32x32xf32>, vector<2x32xf32> -> vector<2x32xf32>
    %cst_48 = arith.constant 9.99999974E-6 : f32
    %71 = vector.broadcast %cst_48 : f32 to vector<2x32xf32>
    %72 = arith.addf %70, %71 : vector<2x32xf32>
    %73 = math.rsqrt %72 : vector<2x32xf32>
    %74 = arith.mulf %68, %73 : vector<2x32xf32>
    %75 = vector.broadcast %4 : vector<1x32xf32> to vector<2x32xf32>
    %76 = arith.mulf %74, %75 : vector<2x32xf32>
    %77 = vector.broadcast %5 : vector<1x32xf32> to vector<2x32xf32>
    %78 = arith.addf %76, %77 : vector<2x32xf32>
    %c1 = arith.constant 1 : index
    %c0_49 = arith.constant 0 : index
    %c0_50 = arith.constant 0 : index
    %79 = vector.load %arg1[%c1, %c0_49, %c0_50] : memref<2x32x32xf32, #tpu.memory_space<vmem>>, vector<1x32x32xf32>
    %80 = vector.shape_cast %79 : vector<1x32x32xf32> to vector<32x32xf32>
    %cst_51 = arith.constant dense<0.000000e+00> : vector<2x32xf32>
    %81 = tpu.matmul %78, %80, %cst_51 {dimension_numbers = #tpu.dot_dimension_numbers<[1], [0], [0], [1], [0, 0, 1, 1], [], []>} : vector<2x32xf32>, vector<32x32xf32>, vector<2x32xf32> -> vector<2x32xf32>
    %c1_52 = arith.constant 1 : index
    %c0_53 = arith.constant 0 : index
    %c0_54 = arith.constant 0 : index
    %82 = vector.load %arg5[%c1_52, %c0_53, %c0_54] : memref<2x1x32xf32, #tpu.memory_space<vmem>>, vector<1x1x32xf32>
    %83 = vector.shape_cast %82 : vector<1x1x32xf32> to vector<1x32xf32>
    %84 = vector.broadcast %83 : vector<1x32xf32> to vector<2x32xf32>
    %85 = arith.addf %81, %84 : vector<2x32xf32>
    %c1_55 = arith.constant 1 : index
    %c0_56 = arith.constant 0 : index
    %c0_57 = arith.constant 0 : index
    %86 = vector.load %arg2[%c1_55, %c0_56, %c0_57] : memref<2x32x32xf32, #tpu.memory_space<vmem>>, vector<1x32x32xf32>
    %87 = vector.shape_cast %86 : vector<1x32x32xf32> to vector<32x32xf32>
    %cst_58 = arith.constant dense<0.000000e+00> : vector<2x32xf32>
    %88 = tpu.matmul %78, %87, %cst_58 {dimension_numbers = #tpu.dot_dimension_numbers<[1], [0], [0], [1], [0, 0, 1, 1], [], []>} : vector<2x32xf32>, vector<32x32xf32>, vector<2x32xf32> -> vector<2x32xf32>
    %c1_59 = arith.constant 1 : index
    %c0_60 = arith.constant 0 : index
    %c0_61 = arith.constant 0 : index
    %89 = vector.load %arg6[%c1_59, %c0_60, %c0_61] : memref<2x1x32xf32, #tpu.memory_space<vmem>>, vector<1x1x32xf32>
    %90 = vector.shape_cast %89 : vector<1x1x32xf32> to vector<1x32xf32>
    %91 = vector.broadcast %90 : vector<1x32xf32> to vector<2x32xf32>
    %92 = arith.addf %88, %91 : vector<2x32xf32>
    %c1_62 = arith.constant 1 : index
    %c0_63 = arith.constant 0 : index
    %c0_64 = arith.constant 0 : index
    %93 = vector.load %arg3[%c1_62, %c0_63, %c0_64] : memref<2x32x32xf32, #tpu.memory_space<vmem>>, vector<1x32x32xf32>
    %94 = vector.shape_cast %93 : vector<1x32x32xf32> to vector<32x32xf32>
    %cst_65 = arith.constant dense<0.000000e+00> : vector<2x32xf32>
    %95 = tpu.matmul %78, %94, %cst_65 {dimension_numbers = #tpu.dot_dimension_numbers<[1], [0], [0], [1], [0, 0, 1, 1], [], []>} : vector<2x32xf32>, vector<32x32xf32>, vector<2x32xf32> -> vector<2x32xf32>
    %c1_66 = arith.constant 1 : index
    %c0_67 = arith.constant 0 : index
    %c0_68 = arith.constant 0 : index
    %96 = vector.load %arg7[%c1_66, %c0_67, %c0_68] : memref<2x1x32xf32, #tpu.memory_space<vmem>>, vector<1x1x32xf32>
    %97 = vector.shape_cast %96 : vector<1x1x32xf32> to vector<1x32xf32>
    %98 = vector.broadcast %97 : vector<1x32xf32> to vector<2x32xf32>
    %99 = arith.addf %95, %98 : vector<2x32xf32>
    %100 = vector.extract_strided_slice %92 {offsets = [0, 0], sizes = [1, 32], strides = [1, 1]} : vector<2x32xf32> to vector<1x32xf32>
    %101 = vector.broadcast %100 : vector<1x32xf32> to vector<2x32xf32>
    %102 = arith.mulf %85, %101 : vector<2x32xf32>
    %cst_69 = arith.constant dense<0.000000e+00> : vector<2x8xf32>
    %103 = tpu.matmul %102, %1, %cst_69 {dimension_numbers = #tpu.dot_dimension_numbers<[1], [0], [0], [1], [0, 0, 1, 1], [], []>} : vector<2x32xf32>, vector<32x8xf32>, vector<2x8xf32> -> vector<2x8xf32>
    %cst_70 = arith.constant 5.000000e-01 : f32
    %104 = vector.broadcast %cst_70 : f32 to vector<2x8xf32>
    %105 = arith.mulf %103, %104 : vector<2x8xf32>
    %106 = vector.extract_strided_slice %92 {offsets = [1, 0], sizes = [1, 32], strides = [1, 1]} : vector<2x32xf32> to vector<1x32xf32>
    %107 = vector.broadcast %106 : vector<1x32xf32> to vector<2x32xf32>
    %108 = arith.mulf %85, %107 : vector<2x32xf32>
    %cst_71 = arith.constant dense<0.000000e+00> : vector<2x8xf32>
    %109 = tpu.matmul %108, %1, %cst_71 {dimension_numbers = #tpu.dot_dimension_numbers<[1], [0], [0], [1], [0, 0, 1, 1], [], []>} : vector<2x32xf32>, vector<32x8xf32>, vector<2x8xf32> -> vector<2x8xf32>
    %cst_72 = arith.constant 5.000000e-01 : f32
    %110 = vector.broadcast %cst_72 : f32 to vector<2x8xf32>
    %111 = arith.mulf %109, %110 : vector<2x8xf32>
    %112 = arith.maximumf %105, %111 : vector<2x8xf32>
    %113 = arith.subf %105, %112 : vector<2x8xf32>
    %114 = math.exp %113 : vector<2x8xf32>
    %115 = arith.subf %111, %112 : vector<2x8xf32>
    %116 = math.exp %115 : vector<2x8xf32>
    %117 = arith.addf %114, %116 : vector<2x8xf32>
    %cst_73 = arith.constant 1.000000e+00 : f32
    %118 = vector.broadcast %cst_73 : f32 to vector<2x8xf32>
    %119 = arith.divf %118, %117 : vector<2x8xf32>
    %cst_74 = arith.constant 0.000000e+00 : f32
    %120 = vector.broadcast %cst_74 : f32 to vector<2x32xf32>
    %121 = arith.mulf %114, %119 : vector<2x8xf32>
    %cst_75 = arith.constant dense<0.000000e+00> : vector<2x32xf32>
    %122 = tpu.matmul %121, %2, %cst_75 {dimension_numbers = #tpu.dot_dimension_numbers<[1], [0], [0], [1], [0, 0, 1, 1], [], []>} : vector<2x8xf32>, vector<8x32xf32>, vector<2x32xf32> -> vector<2x32xf32>
    %123 = vector.extract_strided_slice %99 {offsets = [0, 0], sizes = [1, 32], strides = [1, 1]} : vector<2x32xf32> to vector<1x32xf32>
    %124 = vector.broadcast %123 : vector<1x32xf32> to vector<2x32xf32>
    %125 = arith.mulf %122, %124 : vector<2x32xf32>
    %126 = arith.addf %120, %125 : vector<2x32xf32>
    %127 = arith.mulf %116, %119 : vector<2x8xf32>
    %cst_76 = arith.constant dense<0.000000e+00> : vector<2x32xf32>
    %128 = tpu.matmul %127, %2, %cst_76 {dimension_numbers = #tpu.dot_dimension_numbers<[1], [0], [0], [1], [0, 0, 1, 1], [], []>} : vector<2x8xf32>, vector<8x32xf32>, vector<2x32xf32> -> vector<2x32xf32>
    %129 = vector.extract_strided_slice %99 {offsets = [1, 0], sizes = [1, 32], strides = [1, 1]} : vector<2x32xf32> to vector<1x32xf32>
    %130 = vector.broadcast %129 : vector<1x32xf32> to vector<2x32xf32>
    %131 = arith.mulf %128, %130 : vector<2x32xf32>
    %132 = arith.addf %126, %131 : vector<2x32xf32>
    %c1_77 = arith.constant 1 : index
    %c0_78 = arith.constant 0 : index
    %c0_79 = arith.constant 0 : index
    %133 = vector.load %arg4[%c1_77, %c0_78, %c0_79] : memref<2x32x32xf32, #tpu.memory_space<vmem>>, vector<1x32x32xf32>
    %134 = vector.shape_cast %133 : vector<1x32x32xf32> to vector<32x32xf32>
    %cst_80 = arith.constant dense<0.000000e+00> : vector<2x32xf32>
    %135 = tpu.matmul %132, %134, %cst_80 {dimension_numbers = #tpu.dot_dimension_numbers<[1], [0], [0], [1], [0, 0, 1, 1], [], []>} : vector<2x32xf32>, vector<32x32xf32>, vector<2x32xf32> -> vector<2x32xf32>
    %c1_81 = arith.constant 1 : index
    %c0_82 = arith.constant 0 : index
    %c0_83 = arith.constant 0 : index
    %136 = vector.load %arg8[%c1_81, %c0_82, %c0_83] : memref<2x1x32xf32, #tpu.memory_space<vmem>>, vector<1x1x32xf32>
    %137 = vector.shape_cast %136 : vector<1x1x32xf32> to vector<1x32xf32>
    %138 = vector.broadcast %137 : vector<1x32xf32> to vector<2x32xf32>
    %139 = arith.addf %135, %138 : vector<2x32xf32>
    %cst_84 = arith.constant dense<0.000000e+00> : vector<2x32xf32>
    %140 = tpu.matmul %139, %3, %cst_84 {dimension_numbers = #tpu.dot_dimension_numbers<[1], [0], [0], [1], [0, 0, 1, 1], [], []>} : vector<2x32xf32>, vector<32x32xf32>, vector<2x32xf32> -> vector<2x32xf32>
    %141 = arith.subf %139, %140 : vector<2x32xf32>
    %142 = arith.mulf %141, %141 : vector<2x32xf32>
    %cst_85 = arith.constant dense<0.000000e+00> : vector<2x32xf32>
    %143 = tpu.matmul %142, %3, %cst_85 {dimension_numbers = #tpu.dot_dimension_numbers<[1], [0], [0], [1], [0, 0, 1, 1], [], []>} : vector<2x32xf32>, vector<32x32xf32>, vector<2x32xf32> -> vector<2x32xf32>
    %cst_86 = arith.constant 9.99999974E-6 : f32
    %144 = vector.broadcast %cst_86 : f32 to vector<2x32xf32>
    %145 = arith.addf %143, %144 : vector<2x32xf32>
    %146 = math.rsqrt %145 : vector<2x32xf32>
    %147 = arith.mulf %141, %146 : vector<2x32xf32>
    %148 = vector.broadcast %4 : vector<1x32xf32> to vector<2x32xf32>
    %149 = arith.mulf %147, %148 : vector<2x32xf32>
    %150 = vector.broadcast %5 : vector<1x32xf32> to vector<2x32xf32>
    %151 = arith.addf %149, %150 : vector<2x32xf32>
    %c0_87 = arith.constant 0 : index
    %c0_88 = arith.constant 0 : index
    %152 = vector.load %arg14[%c0_87, %c0_88] : memref<2x32xf32, #tpu.memory_space<vmem>>, vector<2x32xf32>
    tpu.vector_store %arg14[%c0_87, %c0_88], %151 {strides = array<i32>} : memref<2x32xf32, #tpu.memory_space<vmem>>, vector<2x32xf32>,
    return
  }
}

</mosaic_0001>

<llo_original>
// kernel: tune_encoder_fre.1
$region0: #{tune_encoder_fre.1}
  #allocation0 [shape = 'u32[]', space=smem, size = 0x4, offset = 0x4, fixed_abs, tag = 'smem constant byte address 0x4 - core index']
  #allocation1 [shape = 'u32[144,128]{1,0:T(1,128)}', space=vmem, size = 0x12000, scoped, tag = 'internal scratch']
  %s0 = inlined_call_operand.vmem [shape: f32[2,32], index: 0, kind: input, shape index: {}]
  %s1 = inlined_call_operand.vmem [shape: f32[2,32,32], index: 1, kind: input, shape index: {}]
  %s2 = inlined_call_operand.hbm [shape: f32[2,32,32], index: 2, kind: input, shape index: {}]
  %s3 = inlined_call_operand.hbm [shape: f32[2,32,32], index: 3, kind: input, shape index: {}]
  %s4 = inlined_call_operand.hbm [shape: f32[2,32,32], index: 4, kind: input, shape index: {}]
  %s5 = inlined_call_operand.vmem [shape: f32[2,1,32], index: 5, kind: input, shape index: {}]
  %s6 = inlined_call_operand.vmem [shape: f32[2,1,32], index: 6, kind: input, shape index: {}]
  %s7 = inlined_call_operand.vmem [shape: f32[2,1,32], index: 7, kind: input, shape index: {}]
  %s8 = inlined_call_operand.vmem [shape: f32[2,1,32], index: 8, kind: input, shape index: {}]
  %s9 = inlined_call_operand.vmem [shape: f32[32,8], index: 9, kind: input, shape index: {}]
  %s10 = inlined_call_operand.vmem [shape: f32[8,32], index: 10, kind: input, shape index: {}]
  %s11 = inlined_call_operand.hbm [shape: f32[32,32], index: 11, kind: input, shape index: {}]
  %s12 = inlined_call_operand.vmem [shape: f32[1,32], index: 12, kind: input, shape index: {}]
  %s13 = inlined_call_operand.vmem [shape: f32[1,32], index: 13, kind: input, shape index: {}]
  %s14 = inlined_call_operand.hbm [shape: f32[2,32], index: 14, kind: output, shape index: {}]
  %s15 = sld [smem:[#allocation0]]
  $region82: #{tune_encoder_fre.1} parent=0
    _
  %s17 = ssub.s32 1, %s15
  %s18 = scalar_select 0, %s17, %s15
  $region1: #{tune_encoder_fre.1} parent=0
    #allocation2 [shape = 'u8[32768]{0}', space=vmem, size = 0x8000, scoped, tag = 'input window, operand 2, single buffered']
    #allocation3 [shape = 's32[1]{0}', space=sflag, size = 0x4, scoped, tag = 'scoped memory for tune_encoder_fre.1']
    #allocation4 [shape = 's32[1]{0}', space=sflag, size = 0x4, scoped, tag = 'scoped memory for tune_encoder_fre.1']
    #allocation5 [shape = 'u8[32768]{0}', space=vmem, size = 0x8000, scoped, tag = 'input window, operand 3, single buffered']
    #allocation6 [shape = 's32[1]{0}', space=sflag, size = 0x4, scoped, tag = 'scoped memory for tune_encoder_fre.1']
    #allocation7 [shape = 'u8[32768]{0}', space=vmem, size = 0x8000, scoped, tag = 'input window, operand 4, single buffered']
    #allocation8 [shape = 'u8[16384]{0}', space=vmem, size = 0x4000, scoped, tag = 'input window, operand 11, single buffered']
    #allocation9 [shape = 's32[1]{0}', space=sflag, size = 0x4, scoped, tag = 'scoped memory for tune_encoder_fre.1']
    #allocation10 [shape = 'u8[1024]{0}', space=vmem, size = 0x400, scoped, tag = 'output window, operand 0, single buffered']
    %19 = vsyncpa [#allocation3], 0
    %20 = vsyncpa [#allocation6], 0
    %21 = vsyncpa [#allocation9], 0
    %22 = vsyncpa [#allocation4], 0
    // Predicated region
    $region2: #{tune_encoder_fre.1} parent=1 // pred_check
      _
    $region3: #{tune_encoder_fre.1} parent=1 // pred_check_branch
      %24 = sbr.rel (0) target = $region5
    $region4: #{tune_encoder_fre.1} parent=1 // pred_region
      _
    $region5: #{tune_encoder_fre.1} parent=1 // pred_fallthru
      _
    // Predicated region
    $region6: #{tune_encoder_fre.1} parent=1 // pred_check
      _
    $region7: #{tune_encoder_fre.1} parent=1 // pred_check_branch
      %26 = sbr.rel (0) target = $region9
    $region8: #{tune_encoder_fre.1} parent=1 // pred_region
      _
    $region9: #{tune_encoder_fre.1} parent=1 // pred_fallthru
      _
    // Predicated region
    $region10: #{tune_encoder_fre.1} parent=1 // pred_check
      _
    $region11: #{tune_encoder_fre.1} parent=1 // pred_check_branch
      %28 = sbr.rel (0) target = $region13
    $region12: #{tune_encoder_fre.1} parent=1 // pred_region
      %s30 = ssub.s32 1024, 1024
      %31 = vsyncadd [#allocation3], %s30
      %s32 = sshll.u32 [#allocation2], 4
      %s33 = int_to_ptr.vmem [resolvable:$true] %s32
      %38 = dma.hbm_to_vmem [thread:$0]  %s2, 1024, %s33, [#allocation3], 128, 128, 8
    $region13: #{tune_encoder_fre.1} parent=1 // pred_fallthru
      _
    // Predicated region
    $region14: #{tune_encoder_fre.1} parent=1 // pred_check
      _
    $region15: #{tune_encoder_fre.1} parent=1 // pred_check_branch
      %40 = sbr.rel (0) target = $region17
    $region16: #{tune_encoder_fre.1} parent=1 // pred_region
      %s42 = ssub.s32 1024, 1024
      %43 = vsyncadd [#allocation6], %s42
      %s44 = sshll.u32 [#allocation5], 4
      %s45 = int_to_ptr.vmem [resolvable:$true] %s44
      %50 = dma.hbm_to_vmem [thread:$0]  %s3, 1024, %s45, [#allocation6], 128, 128, 8
    $region17: #{tune_encoder_fre.1} parent=1 // pred_fallthru
      _
    // Predicated region
    $region18: #{tune_encoder_fre.1} parent=1 // pred_check
      _
    $region19: #{tune_encoder_fre.1} parent=1 // pred_check_branch
      %52 = sbr.rel (0) target = $region21
    $region20: #{tune_encoder_fre.1} parent=1 // pred_region
      %s54 = ssub.s32 1024, 1024
      %55 = vsyncadd [#allocation6], %s54
      %s56 = sshll.u32 [#allocation7], 4
      %s57 = int_to_ptr.vmem [resolvable:$true] %s56
      %62 = dma.hbm_to_vmem [thread:$0]  %s4, 1024, %s57, [#allocation6], 128, 128, 8
    $region21: #{tune_encoder_fre.1} parent=1 // pred_fallthru
      _
    // Predicated region
    $region22: #{tune_encoder_fre.1} parent=1 // pred_check
      _
    $region23: #{tune_encoder_fre.1} parent=1 // pred_check_branch
      %64 = sbr.rel (0) target = $region25
    $region24: #{tune_encoder_fre.1} parent=1 // pred_region
      _
    $region25: #{tune_encoder_fre.1} parent=1 // pred_fallthru
      _
    // Predicated region
    $region26: #{tune_encoder_fre.1} parent=1 // pred_check
      _
    $region27: #{tune_encoder_fre.1} parent=1 // pred_check_branch
      %66 = sbr.rel (0) target = $region29
    $region28: #{tune_encoder_fre.1} parent=1 // pred_region
      _
    $region29: #{tune_encoder_fre.1} parent=1 // pred_fallthru
      _
    // Predicated region
    $region30: #{tune_encoder_fre.1} parent=1 // pred_check
      _
    $region31: #{tune_encoder_fre.1} parent=1 // pred_check_branch
      %68 = sbr.rel (0) target = $region33
    $region32: #{tune_encoder_fre.1} parent=1 // pred_region
      _
    $region33: #{tune_encoder_fre.1} parent=1 // pred_fallthru
      _
    // Predicated region
    $region34: #{tune_encoder_fre.1} parent=1 // pred_check
      _
    $region35: #{tune_encoder_fre.1} parent=1 // pred_check_branch
      %70 = sbr.rel (0) target = $region37
    $region36: #{tune_encoder_fre.1} parent=1 // pred_region
      _
    $region37: #{tune_encoder_fre.1} parent=1 // pred_fallthru
      _
    // Predicated region
    $region38: #{tune_encoder_fre.1} parent=1 // pred_check
      _
    $region39: #{tune_encoder_fre.1} parent=1 // pred_check_branch
      %72 = sbr.rel (0) target = $region41
    $region40: #{tune_encoder_fre.1} parent=1 // pred_region
      _
    $region41: #{tune_encoder_fre.1} parent=1 // pred_fallthru
      _
    // Predicated region
    $region42: #{tune_encoder_fre.1} parent=1 // pred_check
      _
    $region43: #{tune_encoder_fre.1} parent=1 // pred_check_branch
      %74 = sbr.rel (0) target = $region45
    $region44: #{tune_encoder_fre.1} parent=1 // pred_region
      _
    $region45: #{tune_encoder_fre.1} parent=1 // pred_fallthru
      _
    // Predicated region
    $region46: #{tune_encoder_fre.1} parent=1 // pred_check
      _
    $region47: #{tune_encoder_fre.1} parent=1 // pred_check_branch
      %76 = sbr.rel (0) target = $region49
    $region48: #{tune_encoder_fre.1} parent=1 // pred_region
      %s78 = ssub.s32 512, 512
      %79 = vsyncadd [#allocation9], %s78
      %s80 = sshll.u32 [#allocation8], 4
      %s81 = int_to_ptr.vmem [resolvable:$true] %s80
      %86 = dma.hbm_to_vmem [thread:$0]  %s11, 512, %s81, [#allocation9], 128, 128, 8
    $region49: #{tune_encoder_fre.1} parent=1 // pred_fallthru
      _
    // Predicated region
    $region50: #{tune_encoder_fre.1} parent=1 // pred_check
      _
    $region51: #{tune_encoder_fre.1} parent=1 // pred_check_branch
      %88 = sbr.rel (0) target = $region53
    $region52: #{tune_encoder_fre.1} parent=1 // pred_region
      _
    $region53: #{tune_encoder_fre.1} parent=1 // pred_fallthru
      _
    // Predicated region
    $region54: #{tune_encoder_fre.1} parent=1 // pred_check
      _
    $region55: #{tune_encoder_fre.1} parent=1 // pred_check_branch
      %90 = sbr.rel (0) target = $region57
    $region56: #{tune_encoder_fre.1} parent=1 // pred_region
      _
    $region57: #{tune_encoder_fre.1} parent=1 // pred_fallthru
      _
    // Predicated region
    $region58: #{tune_encoder_fre.1} parent=1 // pred_check
      _
    $region59: #{tune_encoder_fre.1} parent=1 // pred_check_branch
      %92 = sbr.rel (0) target = $region61
    $region60: #{tune_encoder_fre.1} parent=1 // pred_region
      %93 = dma.done [#allocation3], 1024
    $region61: #{tune_encoder_fre.1} parent=1 // pred_fallthru
      _
    // Predicated region
    $region62: #{tune_encoder_fre.1} parent=1 // pred_check
      _
    $region63: #{tune_encoder_fre.1} parent=1 // pred_check_branch
      %95 = sbr.rel (0) target = $region65
    $region64: #{tune_encoder_fre.1} parent=1 // pred_region
      %96 = dma.done [#allocation6], 1024
    $region65: #{tune_encoder_fre.1} parent=1 // pred_fallthru
      _
    // Predicated region
    $region66: #{tune_encoder_fre.1} parent=1 // pred_check
      _
    $region67: #{tune_encoder_fre.1} parent=1 // pred_check_branch
      %98 = sbr.rel (0) target = $region69
    $region68: #{tune_encoder_fre.1} parent=1 // pred_region
      %99 = dma.done [#allocation6], 1024
    $region69: #{tune_encoder_fre.1} parent=1 // pred_fallthru
      _
    // Predicated region
    $region70: #{tune_encoder_fre.1} parent=1 // pred_check
      _
    $region71: #{tune_encoder_fre.1} parent=1 // pred_check_branch
      %101 = sbr.rel (0) target = $region73
    $region72: #{tune_encoder_fre.1} parent=1 // pred_region
      %102 = dma.done [#allocation9], 512
    $region73: #{tune_encoder_fre.1} parent=1 // pred_fallthru
      _
    %v103 = vld [vmem:[%s0] sm:$0x3]
    %v104 = vld [vmem:[%s9] sm:$0xff]
    %v105 = vld [vmem:[%s9 + $0x8] sm:$0xff]
    %v106 = vld [vmem:[%s9 + $0x10] sm:$0xff]
    %v107 = vld [vmem:[%s9 + $0x18] sm:$0xff]
    %v108 = vld [vmem:[%s10] sm:$0xff]
    %v109 = vld [vmem:[#allocation8] sm:$0xff]
    %v110 = vld [vmem:[#allocation8 + $0x8] sm:$0xff]
    %v111 = vld [vmem:[#allocation8 + $0x10] sm:$0xff]
    %v112 = vld [vmem:[#allocation8 + $0x18] sm:$0xff]
    %v113 = vld [vmem:[%s12] sm:$0x1]
    %v114 = vld [vmem:[%s13] sm:$0x1]
    %v115 = vld [vmem:[%s1] sm:$0xff]
    %v116 = vld [vmem:[%s1 + $0x8] sm:$0xff]
    %v117 = vld [vmem:[%s1 + $0x10] sm:$0xff]
    %v118 = vld [vmem:[%s1 + $0x18] sm:$0xff]
    %v119 = vld [vmem:[%s5] sm:$0x1]
    %v121 = vlaneseq
    %v122 = vshrl.u32 %v121, 7
    %v123 = vsub.s32 0, %v122
    %v124 = vrot.slane %v119, %v123
    %vm126 = vcmask 261120
    %v128 = vsel %vm126, %v103, 0
    %130 = vmatprep.subr.mxu0 0.0
    %131 = vmatpush1.msra.mxu0 %v115
    %132 = vmatprep.subr.mxu0 0.0
    %133 = vmatpush1.msra.mxu0 %v116
    %134 = vmatprep.subr.mxu0 0.0
    %135 = vmatpush1.msra.mxu0 %v117
    %136 = vmatprep.subr.mxu0 0.0
    %137 = vmatpush1.msra.mxu0 %v118
    %138 = vmatprep.subr.mxu0 0.0
    %139 = vmatpush1.msra.mxu0 0.0
    %140 = vmatprep.subr.mxu0 0.0
    %141 = vmatpush1.msra.mxu0 0.0
    %142 = vmatprep.subr.mxu0 0.0
    %143 = vmatpush1.msra.mxu0 0.0
    %144 = vmatprep.subr.mxu0 0.0
    %145 = vmatpush1.msra.mxu0 0.0
    %146 = vmatprep.subr.mxu0 0.0
    %147 = vmatpush1.msra.mxu0 0.0
    %148 = vmatprep.subr.mxu0 0.0
    %149 = vmatpush1.msra.mxu0 0.0
    %150 = vmatprep.subr.mxu0 0.0
    %151 = vmatpush1.msra.mxu0 0.0
    %152 = vmatprep.subr.mxu0 0.0
    %153 = vmatpush1.msra.mxu0 0.0
    %154 = vmatprep.subr.mxu0 0.0
    %155 = vmatpush1.msra.mxu0 0.0
    %156 = vmatprep.subr.mxu0 0.0
    %157 = vmatpush1.msra.mxu0 0.0
    %158 = vmatprep.subr.mxu0 0.0
    %159 = vmatpush1.msra.mxu0 0.0
    %160 = vmatprep.subr.mxu0 0.0
    %161 = vmatpush1.msra.mxu0 0.0
    %162 = vmatprep.subr.mxu0 0.0
    %163 = vmatpush1.msra.mxu0 0.0
    %164 = vmatprep.subr.mxu0 0.0
    %165 = vmatpush1.msra.mxu0 0.0
    %166 = vmatprep.subr.mxu0 0.0
    %167 = vmatpush1.msra.mxu0 0.0
    %168 = vmatprep.subr.mxu0 0.0
    %169 = vmatpush1.msra.mxu0 0.0
    %170 = vmatprep.subr.mxu0 0.0
    %171 = vmatpush1.msra.mxu0 0.0
    %172 = vmatprep.subr.mxu0 0.0
    %173 = vmatpush1.msra.mxu0 0.0
    %174 = vmatprep.subr.mxu0 0.0
    %175 = vmatpush1.msra.mxu0 0.0
    %176 = vmatprep.subr.mxu0 0.0
    %177 = vmatpush1.msra.mxu0 0.0
    %178 = vmatprep.subr.mxu0 0.0
    %179 = vmatpush1.msra.mxu0 0.0
    %180 = vmatprep.subr.mxu0 0.0
    %181 = vmatpush1.msra.mxu0 0.0
    %182 = vmatprep.subr.mxu0 0.0
    %183 = vmatpush1.msra.mxu0 0.0
    %184 = vmatprep.subr.mxu0 0.0
    %185 = vmatpush1.msra.mxu0 0.0
    %186 = vmatprep.subr.mxu0 0.0
    %187 = vmatpush1.msra.mxu0 0.0
    %188 = vmatprep.subr.mxu0 0.0
    %189 = vmatpush1.msra.mxu0 0.0
    %190 = vmatprep.subr.mxu0 0.0
    %191 = vmatpush1.msra.mxu0 0.0
    %192 = vmatprep.subr.mxu0 0.0
    %193 = vmatpush1.msra.mxu0 0.0
    %194 = vmatprep.mubr.f32.mxu0 0.0
    %195 = vmatmul.mubr.f32.gmra.mrb[0].mxu0 %v128
    %v196 = vpop.f32.mrb[0].mxu0
    %v197 = vadd.f32 %v124, %v196
    %v198 = vpop.f32.mrb[0].mxu0
    %199 = vdwg.mxu0
    %v200 = vld [vmem:[#allocation2] sm:$0xff]
    %v201 = vld [vmem:[#allocation2 + $0x8] sm:$0xff]
    %v202 = vld [vmem:[#allocation2 + $0x10] sm:$0xff]
    %v203 = vld [vmem:[#allocation2 + $0x18] sm:$0xff]
    %v204 = vld [vmem:[%s6] sm:$0x1]
    %v206 = vlaneseq
    %v207 = vshrl.u32 %v206, 7
    %v208 = vsub.s32 0, %v207
    %v209 = vrot.slane %v204, %v208
    %211 = vmatprep.subr.mxu0 0.0
    %212 = vmatpush1.msra.mxu0 %v200
    %213 = vmatprep.subr.mxu0 0.0
    %214 = vmatpush1.msra.mxu0 %v201
    %215 = vmatprep.subr.mxu0 0.0
    %216 = vmatpush1.msra.mxu0 %v202
    %217 = vmatprep.subr.mxu0 0.0
    %218 = vmatpush1.msra.mxu0 %v203
    %219 = vmatprep.subr.mxu0 0.0
    %220 = vmatpush1.msra.mxu0 0.0
    %221 = vmatprep.subr.mxu0 0.0
    %222 = vmatpush1.msra.mxu0 0.0
    %223 = vmatprep.subr.mxu0 0.0
    %224 = vmatpush1.msra.mxu0 0.0
    %225 = vmatprep.subr.mxu0 0.0
    %226 = vmatpush1.msra.mxu0 0.0
    %227 = vmatprep.subr.mxu0 0.0
    %228 = vmatpush1.msra.mxu0 0.0
    %229 = vmatprep.subr.mxu0 0.0
    %230 = vmatpush1.msra.mxu0 0.0
    %231 = vmatprep.subr.mxu0 0.0
    %232 = vmatpush1.msra.mxu0 0.0
    %233 = vmatprep.subr.mxu0 0.0
    %234 = vmatpush1.msra.mxu0 0.0
    %235 = vmatprep.subr.mxu0 0.0
    %236 = vmatpush1.msra.mxu0 0.0
    %237 = vmatprep.subr.mxu0 0.0
    %238 = vmatpush1.msra.mxu0 0.0
    %239 = vmatprep.subr.mxu0 0.0
    %240 = vmatpush1.msra.mxu0 0.0
    %241 = vmatprep.subr.mxu0 0.0
    %242 = vmatpush1.msra.mxu0 0.0
    %243 = vmatprep.subr.mxu0 0.0
    %244 = vmatpush1.msra.mxu0 0.0
    %245 = vmatprep.subr.mxu0 0.0
    %246 = vmatpush1.msra.mxu0 0.0
    %247 = vmatprep.subr.mxu0 0.0
    %248 = vmatpush1.msra.mxu0 0.0
    %249 = vmatprep.subr.mxu0 0.0
    %250 = vmatpush1.msra.mxu0 0.0
    %251 = vmatprep.subr.mxu0 0.0
    %252 = vmatpush1.msra.mxu0 0.0
    %253 = vmatprep.subr.mxu0 0.0
    %254 = vmatpush1.msra.mxu0 0.0
    %255 = vmatprep.subr.mxu0 0.0
    %256 = vmatpush1.msra.mxu0 0.0
    %257 = vmatprep.subr.mxu0 0.0
    %258 = vmatpush1.msra.mxu0 0.0
    %259 = vmatprep.subr.mxu0 0.0
    %260 = vmatpush1.msra.mxu0 0.0
    %261 = vmatprep.subr.mxu0 0.0
    %262 = vmatpush1.msra.mxu0 0.0
    %263 = vmatprep.subr.mxu0 0.0
    %264 = vmatpush1.msra.mxu0 0.0
    %265 = vmatprep.subr.mxu0 0.0
    %266 = vmatpush1.msra.mxu0 0.0
    %267 = vmatprep.subr.mxu0 0.0
    %268 = vmatpush1.msra.mxu0 0.0
    %269 = vmatprep.subr.mxu0 0.0
    %270 = vmatpush1.msra.mxu0 0.0
    %271 = vmatprep.subr.mxu0 0.0
    %272 = vmatpush1.msra.mxu0 0.0
    %273 = vmatprep.subr.mxu0 0.0
    %274 = vmatpush1.msra.mxu0 0.0
    %275 = vmatprep.mubr.f32.mxu0 0.0
    %276 = vmatmul.mubr.f32.gmra.mrb[0].mxu0 %v128
    %v277 = vpop.f32.mrb[0].mxu0
    %v278 = vadd.f32 %v209, %v277
    %v279 = vpop.f32.mrb[0].mxu0
    %280 = vdwg.mxu0
    %v281 = vld [vmem:[#allocation5] sm:$0xff]
    %v282 = vld [vmem:[#allocation5 + $0x8] sm:$0xff]
    %v283 = vld [vmem:[#allocation5 + $0x10] sm:$0xff]
    %v284 = vld [vmem:[#allocation5 + $0x18] sm:$0xff]
    %v285 = vld [vmem:[%s7] sm:$0x1]
    %v287 = vlaneseq
    %v288 = vshrl.u32 %v287, 7
    %v289 = vsub.s32 0, %v288
    %v290 = vrot.slane %v285, %v289
    %292 = vmatprep.subr.mxu0 0.0
    %293 = vmatpush1.msra.mxu0 %v281
    %294 = vmatprep.subr.mxu0 0.0
    %295 = vmatpush1.msra.mxu0 %v282
    %296 = vmatprep.subr.mxu0 0.0
    %297 = vmatpush1.msra.mxu0 %v283
    %298 = vmatprep.subr.mxu0 0.0
    %299 = vmatpush1.msra.mxu0 %v284
    %300 = vmatprep.subr.mxu0 0.0
    %301 = vmatpush1.msra.mxu0 0.0
    %302 = vmatprep.subr.mxu0 0.0
    %303 = vmatpush1.msra.mxu0 0.0
    %304 = vmatprep.subr.mxu0 0.0
    %305 = vmatpush1.msra.mxu0 0.0
    %306 = vmatprep.subr.mxu0 0.0
    %307 = vmatpush1.msra.mxu0 0.0
    %308 = vmatprep.subr.mxu0 0.0
    %309 = vmatpush1.msra.mxu0 0.0
    %310 = vmatprep.subr.mxu0 0.0
    %311 = vmatpush1.msra.mxu0 0.0
    %312 = vmatprep.subr.mxu0 0.0
    %313 = vmatpush1.msra.mxu0 0.0
    %314 = vmatprep.subr.mxu0 0.0
    %315 = vmatpush1.msra.mxu0 0.0
    %316 = vmatprep.subr.mxu0 0.0
    %317 = vmatpush1.msra.mxu0 0.0
    %318 = vmatprep.subr.mxu0 0.0
    %319 = vmatpush1.msra.mxu0 0.0
    %320 = vmatprep.subr.mxu0 0.0
    %321 = vmatpush1.msra.mxu0 0.0
    %322 = vmatprep.subr.mxu0 0.0
    %323 = vmatpush1.msra.mxu0 0.0
    %324 = vmatprep.subr.mxu0 0.0
    %325 = vmatpush1.msra.mxu0 0.0
    %326 = vmatprep.subr.mxu0 0.0
    %327 = vmatpush1.msra.mxu0 0.0
    %328 = vmatprep.subr.mxu0 0.0
    %329 = vmatpush1.msra.mxu0 0.0
    %330 = vmatprep.subr.mxu0 0.0
    %331 = vmatpush1.msra.mxu0 0.0
    %332 = vmatprep.subr.mxu0 0.0
    %333 = vmatpush1.msra.mxu0 0.0
    %334 = vmatprep.subr.mxu0 0.0
    %335 = vmatpush1.msra.mxu0 0.0
    %336 = vmatprep.subr.mxu0 0.0
    %337 = vmatpush1.msra.mxu0 0.0
    %338 = vmatprep.subr.mxu0 0.0
    %339 = vmatpush1.msra.mxu0 0.0
    %340 = vmatprep.subr.mxu0 0.0
    %341 = vmatpush1.msra.mxu0 0.0
    %342 = vmatprep.subr.mxu0 0.0
    %343 = vmatpush1.msra.mxu0 0.0
    %344 = vmatprep.subr.mxu0 0.0
    %345 = vmatpush1.msra.mxu0 0.0
    %346 = vmatprep.subr.mxu0 0.0
    %347 = vmatpush1.msra.mxu0 0.0
    %348 = vmatprep.subr.mxu0 0.0
    %349 = vmatpush1.msra.mxu0 0.0
    %350 = vmatprep.subr.mxu0 0.0
    %351 = vmatpush1.msra.mxu0 0.0
    %352 = vmatprep.subr.mxu0 0.0
    %353 = vmatpush1.msra.mxu0 0.0
    %354 = vmatprep.subr.mxu0 0.0
    %355 = vmatpush1.msra.mxu0 0.0
    %356 = vmatprep.mubr.f32.mxu0 0.0
    %357 = vmatmul.mubr.f32.gmra.mrb[0].mxu0 %v128
    %v358 = vpop.f32.mrb[0].mxu0
    %v359 = vadd.f32 %v290, %v358
    %v360 = vpop.f32.mrb[0].mxu0
    %361 = vdwg.mxu0
    %v362 = vlaneseq
    %v363 = vshrl.u32 %v362, 7
    %v364 = vsub.s32 0, %v363
    %v365 = vrot.slane %v278, %v364
    %v366 = vmul.f32 %v197, %v365
    %v368 = vsel %vm126, %v366, 0
    %370 = vmatprep.subr.mxu0 0.0
    %371 = vmatpush1.msra.mxu0 %v104
    %372 = vmatprep.subr.mxu0 0.0
    %373 = vmatpush1.msra.mxu0 %v105
    %374 = vmatprep.subr.mxu0 0.0
    %375 = vmatpush1.msra.mxu0 %v106
    %376 = vmatprep.subr.mxu0 0.0
    %377 = vmatpush1.msra.mxu0 %v107
    %378 = vmatprep.subr.mxu0 0.0
    %379 = vmatpush1.msra.mxu0 0.0
    %380 = vmatprep.subr.mxu0 0.0
    %381 = vmatpush1.msra.mxu0 0.0
    %382 = vmatprep.subr.mxu0 0.0
    %383 = vmatpush1.msra.mxu0 0.0
    %384 = vmatprep.subr.mxu0 0.0
    %385 = vmatpush1.msra.mxu0 0.0
    %386 = vmatprep.subr.mxu0 0.0
    %387 = vmatpush1.msra.mxu0 0.0
    %388 = vmatprep.subr.mxu0 0.0
    %389 = vmatpush1.msra.mxu0 0.0
    %390 = vmatprep.subr.mxu0 0.0
    %391 = vmatpush1.msra.mxu0 0.0
    %392 = vmatprep.subr.mxu0 0.0
    %393 = vmatpush1.msra.mxu0 0.0
    %394 = vmatprep.subr.mxu0 0.0
    %395 = vmatpush1.msra.mxu0 0.0
    %396 = vmatprep.subr.mxu0 0.0
    %397 = vmatpush1.msra.mxu0 0.0
    %398 = vmatprep.subr.mxu0 0.0
    %399 = vmatpush1.msra.mxu0 0.0
    %400 = vmatprep.subr.mxu0 0.0
    %401 = vmatpush1.msra.mxu0 0.0
    %402 = vmatprep.subr.mxu0 0.0
    %403 = vmatpush1.msra.mxu0 0.0
    %404 = vmatprep.subr.mxu0 0.0
    %405 = vmatpush1.msra.mxu0 0.0
    %406 = vmatprep.subr.mxu0 0.0
    %407 = vmatpush1.msra.mxu0 0.0
    %408 = vmatprep.subr.mxu0 0.0
    %409 = vmatpush1.msra.mxu0 0.0
    %410 = vmatprep.subr.mxu0 0.0
    %411 = vmatpush1.msra.mxu0 0.0
    %412 = vmatprep.subr.mxu0 0.0
    %413 = vmatpush1.msra.mxu0 0.0
    %414 = vmatprep.subr.mxu0 0.0
    %415 = vmatpush1.msra.mxu0 0.0
    %416 = vmatprep.subr.mxu0 0.0
    %417 = vmatpush1.msra.mxu0 0.0
    %418 = vmatprep.subr.mxu0 0.0
    %419 = vmatpush1.msra.mxu0 0.0
    %420 = vmatprep.subr.mxu0 0.0
    %421 = vmatpush1.msra.mxu0 0.0
    %422 = vmatprep.subr.mxu0 0.0
    %423 = vmatpush1.msra.mxu0 0.0
    %424 = vmatprep.subr.mxu0 0.0
    %425 = vmatpush1.msra.mxu0 0.0
    %426 = vmatprep.subr.mxu0 0.0
    %427 = vmatpush1.msra.mxu0 0.0
    %428 = vmatprep.subr.mxu0 0.0
    %429 = vmatpush1.msra.mxu0 0.0
    %430 = vmatprep.subr.mxu0 0.0
    %431 = vmatpush1.msra.mxu0 0.0
    %432 = vmatprep.subr.mxu0 0.0
    %433 = vmatpush1.msra.mxu0 0.0
    %434 = vmatprep.mubr.f32.mxu0 0.0
    %435 = vmatmul.mubr.f32.gmra.mrb[0].mxu0 %v368
    %v436 = vpop.f32.mrb[0].mxu0
    %v437 = vadd.f32 0.0, %v436
    %v438 = vpop.f32.mrb[0].mxu0
    %439 = vdwg.mxu0
    %v440 = vmul.f32 %v437, 0.5
    %v441 = vlaneseq
    %v442 = vshrl.u32 %v441, 7
    %v443 = vsub.s32 1, %v442
    %v444 = vrot.slane %v278, %v443
    %v445 = vmul.f32 %v197, %v444
    %v447 = vsel %vm126, %v445, 0
    %449 = vmatprep.subr.mxu0 0.0
    %450 = vmatpush1.msra.mxu0 %v104
    %451 = vmatprep.subr.mxu0 0.0
    %452 = vmatpush1.msra.mxu0 %v105
    %453 = vmatprep.subr.mxu0 0.0
    %454 = vmatpush1.msra.mxu0 %v106
    %455 = vmatprep.subr.mxu0 0.0
    %456 = vmatpush1.msra.mxu0 %v107
    %457 = vmatprep.subr.mxu0 0.0
    %458 = vmatpush1.msra.mxu0 0.0
    %459 = vmatprep.subr.mxu0 0.0
    %460 = vmatpush1.msra.mxu0 0.0
    %461 = vmatprep.subr.mxu0 0.0
    %462 = vmatpush1.msra.mxu0 0.0
    %463 = vmatprep.subr.mxu0 0.0
    %464 = vmatpush1.msra.mxu0 0.0
    %465 = vmatprep.subr.mxu0 0.0
    %466 = vmatpush1.msra.mxu0 0.0
    %467 = vmatprep.subr.mxu0 0.0
    %468 = vmatpush1.msra.mxu0 0.0
    %469 = vmatprep.subr.mxu0 0.0
    %470 = vmatpush1.msra.mxu0 0.0
    %471 = vmatprep.subr.mxu0 0.0
    %472 = vmatpush1.msra.mxu0 0.0
    %473 = vmatprep.subr.mxu0 0.0
    %474 = vmatpush1.msra.mxu0 0.0
    %475 = vmatprep.subr.mxu0 0.0
    %476 = vmatpush1.msra.mxu0 0.0
    %477 = vmatprep.subr.mxu0 0.0
    %478 = vmatpush1.msra.mxu0 0.0
    %479 = vmatprep.subr.mxu0 0.0
    %480 = vmatpush1.msra.mxu0 0.0
    %481 = vmatprep.subr.mxu0 0.0
    %482 = vmatpush1.msra.mxu0 0.0
    %483 = vmatprep.subr.mxu0 0.0
    %484 = vmatpush1.msra.mxu0 0.0
    %485 = vmatprep.subr.mxu0 0.0
    %486 = vmatpush1.msra.mxu0 0.0
    %487 = vmatprep.subr.mxu0 0.0
    %488 = vmatpush1.msra.mxu0 0.0
    %489 = vmatprep.subr.mxu0 0.0
    %490 = vmatpush1.msra.mxu0 0.0
    %491 = vmatprep.subr.mxu0 0.0
    %492 = vmatpush1.msra.mxu0 0.0
    %493 = vmatprep.subr.mxu0 0.0
    %494 = vmatpush1.msra.mxu0 0.0
    %495 = vmatprep.subr.mxu0 0.0
    %496 = vmatpush1.msra.mxu0 0.0
    %497 = vmatprep.subr.mxu0 0.0
    %498 = vmatpush1.msra.mxu0 0.0
    %499 = vmatprep.subr.mxu0 0.0
    %500 = vmatpush1.msra.mxu0 0.0
    %501 = vmatprep.subr.mxu0 0.0
    %502 = vmatpush1.msra.mxu0 0.0
    %503 = vmatprep.subr.mxu0 0.0
    %504 = vmatpush1.msra.mxu0 0.0
    %505 = vmatprep.subr.mxu0 0.0
    %506 = vmatpush1.msra.mxu0 0.0
    %507 = vmatprep.subr.mxu0 0.0
    %508 = vmatpush1.msra.mxu0 0.0
    %509 = vmatprep.subr.mxu0 0.0
    %510 = vmatpush1.msra.mxu0 0.0
    %511 = vmatprep.subr.mxu0 0.0
    %512 = vmatpush1.msra.mxu0 0.0
    %513 = vmatprep.mubr.f32.mxu0 0.0
    %514 = vmatmul.mubr.f32.gmra.mrb[0].mxu0 %v447
    %v515 = vpop.f32.mrb[0].mxu0
    %v516 = vadd.f32 0.0, %v515
    %v517 = vpop.f32.mrb[0].mxu0
    %518 = vdwg.mxu0
    %v519 = vmul.f32 %v516, 0.5
    %v520 = vmax.f32 %v440, %v519
    %v521 = vsub.f32 %v440, %v520
    %v522 = vmul.f32 %v521, 1.442695
    %v523 = vpow.pop %v522
    %v524 = vsub.f32 %v519, %v520
    %v525 = vmul.f32 %v524, 1.442695
    %v526 = vpow.pop %v525
    %v527 = vadd.f32 %v523, %v526
    %v528 = vrcp.pop %v527
    %v529 = vmul.f32 1.0, %v528
    %v530 = vmul.f32 %v523, %v529
    %vm531 = vcmask 64512
    %v533 = vsel %vm531, %v530, 0
    %535 = vmatprep.subr.mxu0 0.0
    %536 = vmatpush1.msra.mxu0 %v108
    %537 = vmatprep.subr.mxu0 0.0
    %538 = vmatpush1.msra.mxu0 0.0
    %539 = vmatprep.subr.mxu0 0.0
    %540 = vmatpush1.msra.mxu0 0.0
    %541 = vmatprep.subr.mxu0 0.0
    %542 = vmatpush1.msra.mxu0 0.0
    %543 = vmatprep.subr.mxu0 0.0
    %544 = vmatpush1.msra.mxu0 0.0
    %545 = vmatprep.subr.mxu0 0.0
    %546 = vmatpush1.msra.mxu0 0.0
    %547 = vmatprep.subr.mxu0 0.0
    %548 = vmatpush1.msra.mxu0 0.0
    %549 = vmatprep.subr.mxu0 0.0
    %550 = vmatpush1.msra.mxu0 0.0
    %551 = vmatprep.subr.mxu0 0.0
    %552 = vmatpush1.msra.mxu0 0.0
    %553 = vmatprep.subr.mxu0 0.0
    %554 = vmatpush1.msra.mxu0 0.0
    %555 = vmatprep.subr.mxu0 0.0
    %556 = vmatpush1.msra.mxu0 0.0
    %557 = vmatprep.subr.mxu0 0.0
    %558 = vmatpush1.msra.mxu0 0.0
    %559 = vmatprep.subr.mxu0 0.0
    %560 = vmatpush1.msra.mxu0 0.0
    %561 = vmatprep.subr.mxu0 0.0
    %562 = vmatpush1.msra.mxu0 0.0
    %563 = vmatprep.subr.mxu0 0.0
    %564 = vmatpush1.msra.mxu0 0.0
    %565 = vmatprep.subr.mxu0 0.0
    %566 = vmatpush1.msra.mxu0 0.0
    %567 = vmatprep.subr.mxu0 0.0
    %568 = vmatpush1.msra.mxu0 0.0
    %569 = vmatprep.subr.mxu0 0.0
    %570 = vmatpush1.msra.mxu0 0.0
    %571 = vmatprep.subr.mxu0 0.0
    %572 = vmatpush1.msra.mxu0 0.0
    %573 = vmatprep.subr.mxu0 0.0
    %574 = vmatpush1.msra.mxu0 0.0
    %575 = vmatprep.subr.mxu0 0.0
    %576 = vmatpush1.msra.mxu0 0.0
    %577 = vmatprep.subr.mxu0 0.0
    %578 = vmatpush1.msra.mxu0 0.0
    %579 = vmatprep.subr.mxu0 0.0
    %580 = vmatpush1.msra.mxu0 0.0
    %581 = vmatprep.subr.mxu0 0.0
    %582 = vmatpush1.msra.mxu0 0.0
    %583 = vmatprep.subr.mxu0 0.0
    %584 = vmatpush1.msra.mxu0 0.0
    %585 = vmatprep.subr.mxu0 0.0
    %586 = vmatpush1.msra.mxu0 0.0
    %587 = vmatprep.subr.mxu0 0.0
    %588 = vmatpush1.msra.mxu0 0.0
    %589 = vmatprep.subr.mxu0 0.0
    %590 = vmatpush1.msra.mxu0 0.0
    %591 = vmatprep.subr.mxu0 0.0
    %592 = vmatpush1.msra.mxu0 0.0
    %593 = vmatprep.subr.mxu0 0.0
    %594 = vmatpush1.msra.mxu0 0.0
    %595 = vmatprep.subr.mxu0 0.0
    %596 = vmatpush1.msra.mxu0 0.0
    %597 = vmatprep.subr.mxu0 0.0
    %598 = vmatpush1.msra.mxu0 0.0
    %599 = vmatprep.mubr.f32.mxu0 0.0
    %600 = vmatmul.mubr.f32.gmra.mrb[0].mxu0 %v533
    %v601 = vpop.f32.mrb[0].mxu0
    %v602 = vadd.f32 0.0, %v601
    %v603 = vpop.f32.mrb[0].mxu0
    %604 = vdwg.mxu0
    %v605 = vlaneseq
    %v606 = vshrl.u32 %v605, 7
    %v607 = vsub.s32 0, %v606
    %v608 = vrot.slane %v359, %v607
    %v609 = vmul.f32 %v602, %v608
    %v610 = vadd.f32 %v609, 0.0
    %v611 = vmul.f32 %v526, %v529
    %v613 = vsel %vm531, %v611, 0
    %615 = vmatprep.subr.mxu0 0.0
    %616 = vmatpush1.msra.mxu0 %v108
    %617 = vmatprep.subr.mxu0 0.0
    %618 = vmatpush1.msra.mxu0 0.0
    %619 = vmatprep.subr.mxu0 0.0
    %620 = vmatpush1.msra.mxu0 0.0
    %621 = vmatprep.subr.mxu0 0.0
    %622 = vmatpush1.msra.mxu0 0.0
    %623 = vmatprep.subr.mxu0 0.0
    %624 = vmatpush1.msra.mxu0 0.0
    %625 = vmatprep.subr.mxu0 0.0
    %626 = vmatpush1.msra.mxu0 0.0
    %627 = vmatprep.subr.mxu0 0.0
    %628 = vmatpush1.msra.mxu0 0.0
    %629 = vmatprep.subr.mxu0 0.0
    %630 = vmatpush1.msra.mxu0 0.0
    %631 = vmatprep.subr.mxu0 0.0
    %632 = vmatpush1.msra.mxu0 0.0
    %633 = vmatprep.subr.mxu0 0.0
    %634 = vmatpush1.msra.mxu0 0.0
    %635 = vmatprep.subr.mxu0 0.0
    %636 = vmatpush1.msra.mxu0 0.0
    %637 = vmatprep.subr.mxu0 0.0
    %638 = vmatpush1.msra.mxu0 0.0
    %639 = vmatprep.subr.mxu0 0.0
    %640 = vmatpush1.msra.mxu0 0.0
    %641 = vmatprep.subr.mxu0 0.0
    %642 = vmatpush1.msra.mxu0 0.0
    %643 = vmatprep.subr.mxu0 0.0
    %644 = vmatpush1.msra.mxu0 0.0
    %645 = vmatprep.subr.mxu0 0.0
    %646 = vmatpush1.msra.mxu0 0.0
    %647 = vmatprep.subr.mxu0 0.0
    %648 = vmatpush1.msra.mxu0 0.0
    %649 = vmatprep.subr.mxu0 0.0
    %650 = vmatpush1.msra.mxu0 0.0
    %651 = vmatprep.subr.mxu0 0.0
    %652 = vmatpush1.msra.mxu0 0.0
    %653 = vmatprep.subr.mxu0 0.0
    %654 = vmatpush1.msra.mxu0 0.0
    %655 = vmatprep.subr.mxu0 0.0
    %656 = vmatpush1.msra.mxu0 0.0
    %657 = vmatprep.subr.mxu0 0.0
    %658 = vmatpush1.msra.mxu0 0.0
    %659 = vmatprep.subr.mxu0 0.0
    %660 = vmatpush1.msra.mxu0 0.0
    %661 = vmatprep.subr.mxu0 0.0
    %662 = vmatpush1.msra.mxu0 0.0
    %663 = vmatprep.subr.mxu0 0.0
    %664 = vmatpush1.msra.mxu0 0.0
    %665 = vmatprep.subr.mxu0 0.0
    %666 = vmatpush1.msra.mxu0 0.0
    %667 = vmatprep.subr.mxu0 0.0
    %668 = vmatpush1.msra.mxu0 0.0
    %669 = vmatprep.subr.mxu0 0.0
    %670 = vmatpush1.msra.mxu0 0.0
    %671 = vmatprep.subr.mxu0 0.0
    %672 = vmatpush1.msra.mxu0 0.0
    %673 = vmatprep.subr.mxu0 0.0
    %674 = vmatpush1.msra.mxu0 0.0
    %675 = vmatprep.subr.mxu0 0.0
    %676 = vmatpush1.msra.mxu0 0.0
    %677 = vmatprep.subr.mxu0 0.0
    %678 = vmatpush1.msra.mxu0 0.0
    %679 = vmatprep.mubr.f32.mxu0 0.0
    %680 = vmatmul.mubr.f32.gmra.mrb[0].mxu0 %v613
    %v681 = vpop.f32.mrb[0].mxu0
    %v682 = vadd.f32 0.0, %v681
    %v683 = vpop.f32.mrb[0].mxu0
    %684 = vdwg.mxu0
    %v685 = vlaneseq
    %v686 = vshrl.u32 %v685, 7
    %v687 = vsub.s32 1, %v686
    %v688 = vrot.slane %v359, %v687
    %v689 = vmul.f32 %v682, %v688
    %v690 = vadd.f32 %v610, %v689
    %v691 = vld [vmem:[#allocation7] sm:$0xff]
    %v692 = vld [vmem:[#allocation7 + $0x8] sm:$0xff]
    %v693 = vld [vmem:[#allocation7 + $0x10] sm:$0xff]
    %v694 = vld [vmem:[#allocation7 + $0x18] sm:$0xff]
    %v695 = vld [vmem:[%s8] sm:$0x1]
    %v697 = vlaneseq
    %v698 = vshrl.u32 %v697, 7
    %v699 = vsub.s32 0, %v698
    %v700 = vrot.slane %v695, %v699
    %v703 = vsel %vm126, %v690, 0
    %705 = vmatprep.subr.mxu0 0.0
    %706 = vmatpush1.msra.mxu0 %v691
    %707 = vmatprep.subr.mxu0 0.0
    %708 = vmatpush1.msra.mxu0 %v692
    %709 = vmatprep.subr.mxu0 0.0
    %710 = vmatpush1.msra.mxu0 %v693
    %711 = vmatprep.subr.mxu0 0.0
    %712 = vmatpush1.msra.mxu0 %v694
    %713 = vmatprep.subr.mxu0 0.0
    %714 = vmatpush1.msra.mxu0 0.0
    %715 = vmatprep.subr.mxu0 0.0
    %716 = vmatpush1.msra.mxu0 0.0
    %717 = vmatprep.subr.mxu0 0.0
    %718 = vmatpush1.msra.mxu0 0.0
    %719 = vmatprep.subr.mxu0 0.0
    %720 = vmatpush1.msra.mxu0 0.0
    %721 = vmatprep.subr.mxu0 0.0
    %722 = vmatpush1.msra.mxu0 0.0
    %723 = vmatprep.subr.mxu0 0.0
    %724 = vmatpush1.msra.mxu0 0.0
    %725 = vmatprep.subr.mxu0 0.0
    %726 = vmatpush1.msra.mxu0 0.0
    %727 = vmatprep.subr.mxu0 0.0
    %728 = vmatpush1.msra.mxu0 0.0
    %729 = vmatprep.subr.mxu0 0.0
    %730 = vmatpush1.msra.mxu0 0.0
    %731 = vmatprep.subr.mxu0 0.0
    %732 = vmatpush1.msra.mxu0 0.0
    %733 = vmatprep.subr.mxu0 0.0
    %734 = vmatpush1.msra.mxu0 0.0
    %735 = vmatprep.subr.mxu0 0.0
    %736 = vmatpush1.msra.mxu0 0.0
    %737 = vmatprep.subr.mxu0 0.0
    %738 = vmatpush1.msra.mxu0 0.0
    %739 = vmatprep.subr.mxu0 0.0
    %740 = vmatpush1.msra.mxu0 0.0
    %741 = vmatprep.subr.mxu0 0.0
    %742 = vmatpush1.msra.mxu0 0.0
    %743 = vmatprep.subr.mxu0 0.0
    %744 = vmatpush1.msra.mxu0 0.0
    %745 = vmatprep.subr.mxu0 0.0
    %746 = vmatpush1.msra.mxu0 0.0
    %747 = vmatprep.subr.mxu0 0.0
    %748 = vmatpush1.msra.mxu0 0.0
    %749 = vmatprep.subr.mxu0 0.0
    %750 = vmatpush1.msra.mxu0 0.0
    %751 = vmatprep.subr.mxu0 0.0
    %752 = vmatpush1.msra.mxu0 0.0
    %753 = vmatprep.subr.mxu0 0.0
    %754 = vmatpush1.msra.mxu0 0.0
    %755 = vmatprep.subr.mxu0 0.0
    %756 = vmatpush1.msra.mxu0 0.0
    %757 = vmatprep.subr.mxu0 0.0
    %758 = vmatpush1.msra.mxu0 0.0
    %759 = vmatprep.subr.mxu0 0.0
    %760 = vmatpush1.msra.mxu0 0.0
    %761 = vmatprep.subr.mxu0 0.0
    %762 = vmatpush1.msra.mxu0 0.0
    %763 = vmatprep.subr.mxu0 0.0
    %764 = vmatpush1.msra.mxu0 0.0
    %765 = vmatprep.subr.mxu0 0.0
    %766 = vmatpush1.msra.mxu0 0.0
    %767 = vmatprep.subr.mxu0 0.0
    %768 = vmatpush1.msra.mxu0 0.0
    %769 = vmatprep.mubr.f32.mxu0 0.0
    %770 = vmatmul.mubr.f32.gmra.mrb[0].mxu0 %v703
    %v771 = vpop.f32.mrb[0].mxu0
    %v772 = vadd.f32 %v700, %v771
    %v773 = vpop.f32.mrb[0].mxu0
    %774 = vdwg.mxu0
    %v776 = vsel %vm126, %v772, 0
    %778 = vmatprep.subr.mxu0 0.0
    %779 = vmatpush1.msra.mxu0 %v109
    %780 = vmatprep.subr.mxu0 0.0
    %781 = vmatpush1.msra.mxu0 %v110
    %782 = vmatprep.subr.mxu0 0.0
    %783 = vmatpush1.msra.mxu0 %v111
    %784 = vmatprep.subr.mxu0 0.0
    %785 = vmatpush1.msra.mxu0 %v112
    %786 = vmatprep.subr.mxu0 0.0
    %787 = vmatpush1.msra.mxu0 0.0
    %788 = vmatprep.subr.mxu0 0.0
    %789 = vmatpush1.msra.mxu0 0.0
    %790 = vmatprep.subr.mxu0 0.0
    %791 = vmatpush1.msra.mxu0 0.0
    %792 = vmatprep.subr.mxu0 0.0
    %793 = vmatpush1.msra.mxu0 0.0
    %794 = vmatprep.subr.mxu0 0.0
    %795 = vmatpush1.msra.mxu0 0.0
    %796 = vmatprep.subr.mxu0 0.0
    %797 = vmatpush1.msra.mxu0 0.0
    %798 = vmatprep.subr.mxu0 0.0
    %799 = vmatpush1.msra.mxu0 0.0
    %800 = vmatprep.subr.mxu0 0.0
    %801 = vmatpush1.msra.mxu0 0.0
    %802 = vmatprep.subr.mxu0 0.0
    %803 = vmatpush1.msra.mxu0 0.0
    %804 = vmatprep.subr.mxu0 0.0
    %805 = vmatpush1.msra.mxu0 0.0
    %806 = vmatprep.subr.mxu0 0.0
    %807 = vmatpush1.msra.mxu0 0.0
    %808 = vmatprep.subr.mxu0 0.0
    %809 = vmatpush1.msra.mxu0 0.0
    %810 = vmatprep.subr.mxu0 0.0
    %811 = vmatpush1.msra.mxu0 0.0
    %812 = vmatprep.subr.mxu0 0.0
    %813 = vmatpush1.msra.mxu0 0.0
    %814 = vmatprep.subr.mxu0 0.0
    %815 = vmatpush1.msra.mxu0 0.0
    %816 = vmatprep.subr.mxu0 0.0
    %817 = vmatpush1.msra.mxu0 0.0
    %818 = vmatprep.subr.mxu0 0.0
    %819 = vmatpush1.msra.mxu0 0.0
    %820 = vmatprep.subr.mxu0 0.0
    %821 = vmatpush1.msra.mxu0 0.0
    %822 = vmatprep.subr.mxu0 0.0
    %823 = vmatpush1.msra.mxu0 0.0
    %824 = vmatprep.subr.mxu0 0.0
    %825 = vmatpush1.msra.mxu0 0.0
    %826 = vmatprep.subr.mxu0 0.0
    %827 = vmatpush1.msra.mxu0 0.0
    %828 = vmatprep.subr.mxu0 0.0
    %829 = vmatpush1.msra.mxu0 0.0
    %830 = vmatprep.subr.mxu0 0.0
    %831 = vmatpush1.msra.mxu0 0.0
    %832 = vmatprep.subr.mxu0 0.0
    %833 = vmatpush1.msra.mxu0 0.0
    %834 = vmatprep.subr.mxu0 0.0
    %835 = vmatpush1.msra.mxu0 0.0
    %836 = vmatprep.subr.mxu0 0.0
    %837 = vmatpush1.msra.mxu0 0.0
    %838 = vmatprep.subr.mxu0 0.0
    %839 = vmatpush1.msra.mxu0 0.0
    %840 = vmatprep.subr.mxu0 0.0
    %841 = vmatpush1.msra.mxu0 0.0
    %842 = vmatprep.mubr.f32.mxu0 0.0
    %843 = vmatmul.mubr.f32.gmra.mrb[0].mxu0 %v776
    %v844 = vpop.f32.mrb[0].mxu0
    %v845 = vadd.f32 0.0, %v844
    %v846 = vpop.f32.mrb[0].mxu0
    %847 = vdwg.mxu0
    %v848 = vsub.f32 %v772, %v845
    %v849 = vmul.f32 %v848, %v848
    %v851 = vsel %vm126, %v849, 0
    %853 = vmatprep.subr.mxu0 0.0
    %854 = vmatpush1.msra.mxu0 %v109
    %855 = vmatprep.subr.mxu0 0.0
    %856 = vmatpush1.msra.mxu0 %v110
    %857 = vmatprep.subr.mxu0 0.0
    %858 = vmatpush1.msra.mxu0 %v111
    %859 = vmatprep.subr.mxu0 0.0
    %860 = vmatpush1.msra.mxu0 %v112
    %861 = vmatprep.subr.mxu0 0.0
    %862 = vmatpush1.msra.mxu0 0.0
    %863 = vmatprep.subr.mxu0 0.0
    %864 = vmatpush1.msra.mxu0 0.0
    %865 = vmatprep.subr.mxu0 0.0
    %866 = vmatpush1.msra.mxu0 0.0
    %867 = vmatprep.subr.mxu0 0.0
    %868 = vmatpush1.msra.mxu0 0.0
    %869 = vmatprep.subr.mxu0 0.0
    %870 = vmatpush1.msra.mxu0 0.0
    %871 = vmatprep.subr.mxu0 0.0
    %872 = vmatpush1.msra.mxu0 0.0
    %873 = vmatprep.subr.mxu0 0.0
    %874 = vmatpush1.msra.mxu0 0.0
    %875 = vmatprep.subr.mxu0 0.0
    %876 = vmatpush1.msra.mxu0 0.0
    %877 = vmatprep.subr.mxu0 0.0
    %878 = vmatpush1.msra.mxu0 0.0
    %879 = vmatprep.subr.mxu0 0.0
    %880 = vmatpush1.msra.mxu0 0.0
    %881 = vmatprep.subr.mxu0 0.0
    %882 = vmatpush1.msra.mxu0 0.0
    %883 = vmatprep.subr.mxu0 0.0
    %884 = vmatpush1.msra.mxu0 0.0
    %885 = vmatprep.subr.mxu0 0.0
    %886 = vmatpush1.msra.mxu0 0.0
    %887 = vmatprep.subr.mxu0 0.0
    %888 = vmatpush1.msra.mxu0 0.0
    %889 = vmatprep.subr.mxu0 0.0
    %890 = vmatpush1.msra.mxu0 0.0
    %891 = vmatprep.subr.mxu0 0.0
    %892 = vmatpush1.msra.mxu0 0.0
    %893 = vmatprep.subr.mxu0 0.0
    %894 = vmatpush1.msra.mxu0 0.0
    %895 = vmatprep.subr.mxu0 0.0
    %896 = vmatpush1.msra.mxu0 0.0
    %897 = vmatprep.subr.mxu0 0.0
    %898 = vmatpush1.msra.mxu0 0.0
    %899 = vmatprep.subr.mxu0 0.0
    %900 = vmatpush1.msra.mxu0 0.0
    %901 = vmatprep.subr.mxu0 0.0
    %902 = vmatpush1.msra.mxu0 0.0
    %903 = vmatprep.subr.mxu0 0.0
    %904 = vmatpush1.msra.mxu0 0.0
    %905 = vmatprep.subr.mxu0 0.0
    %906 = vmatpush1.msra.mxu0 0.0
    %907 = vmatprep.subr.mxu0 0.0
    %908 = vmatpush1.msra.mxu0 0.0
    %909 = vmatprep.subr.mxu0 0.0
    %910 = vmatpush1.msra.mxu0 0.0
    %911 = vmatprep.subr.mxu0 0.0
    %912 = vmatpush1.msra.mxu0 0.0
    %913 = vmatprep.subr.mxu0 0.0
    %914 = vmatpush1.msra.mxu0 0.0
    %915 = vmatprep.subr.mxu0 0.0
    %916 = vmatpush1.msra.mxu0 0.0
    %917 = vmatprep.mubr.f32.mxu0 0.0
    %918 = vmatmul.mubr.f32.gmra.mrb[0].mxu0 %v851
    %v919 = vpop.f32.mrb[0].mxu0
    %v920 = vadd.f32 1e-05, %v919
    %v921 = vpop.f32.mrb[0].mxu0
    %922 = vdwg.mxu0
    %v923 = vrsqrt.pop %v920
    %v924 = vmul.f32 %v848, %v923
    %v926 = vlaneseq
    %v927 = vshrl.u32 %v926, 7
    %v928 = vsub.s32 0, %v927
    %v929 = vrot.slane %v113, %v928
    %v931 = vmul.f32 %v924, %v929
    %v933 = vlaneseq
    %v934 = vshrl.u32 %v933, 7
    %v935 = vsub.s32 0, %v934
    %v936 = vrot.slane %v114, %v935
    %v938 = vadd.f32 %v931, %v936
    %s939 = scalar_lea.vmem %s1, 32
    %v940 = vld [vmem:[%s939] sm:$0xff]
    %v941 = vld [vmem:[%s939 + $0x8] sm:$0xff]
    %v942 = vld [vmem:[%s939 + $0x10] sm:$0xff]
    %v943 = vld [vmem:[%s939 + $0x18] sm:$0xff]
    %s944 = scalar_lea.vmem %s5, 1
    %v945 = vld [vmem:[%s944] sm:$0x1]
    %v947 = vlaneseq
    %v948 = vshrl.u32 %v947, 7
    %v949 = vsub.s32 0, %v948
    %v950 = vrot.slane %v945, %v949
    %v953 = vsel %vm126, %v938, 0
    %955 = vmatprep.subr.mxu0 0.0
    %956 = vmatpush1.msra.mxu0 %v940
    %957 = vmatprep.subr.mxu0 0.0
    %958 = vmatpush1.msra.mxu0 %v941
    %959 = vmatprep.subr.mxu0 0.0
    %960 = vmatpush1.msra.mxu0 %v942
    %961 = vmatprep.subr.mxu0 0.0
    %962 = vmatpush1.msra.mxu0 %v943
    %963 = vmatprep.subr.mxu0 0.0
    %964 = vmatpush1.msra.mxu0 0.0
    %965 = vmatprep.subr.mxu0 0.0
    %966 = vmatpush1.msra.mxu0 0.0
    %967 = vmatprep.subr.mxu0 0.0
    %968 = vmatpush1.msra.mxu0 0.0
    %969 = vmatprep.subr.mxu0 0.0
    %970 = vmatpush1.msra.mxu0 0.0
    %971 = vmatprep.subr.mxu0 0.0
    %972 = vmatpush1.msra.mxu0 0.0
    %973 = vmatprep.subr.mxu0 0.0
    %974 = vmatpush1.msra.mxu0 0.0
    %975 = vmatprep.subr.mxu0 0.0
    %976 = vmatpush1.msra.mxu0 0.0
    %977 = vmatprep.subr.mxu0 0.0
    %978 = vmatpush1.msra.mxu0 0.0
    %979 = vmatprep.subr.mxu0 0.0
    %980 = vmatpush1.msra.mxu0 0.0
    %981 = vmatprep.subr.mxu0 0.0
    %982 = vmatpush1.msra.mxu0 0.0
    %983 = vmatprep.subr.mxu0 0.0
    %984 = vmatpush1.msra.mxu0 0.0
    %985 = vmatprep.subr.mxu0 0.0
    %986 = vmatpush1.msra.mxu0 0.0
    %987 = vmatprep.subr.mxu0 0.0
    %988 = vmatpush1.msra.mxu0 0.0
    %989 = vmatprep.subr.mxu0 0.0
    %990 = vmatpush1.msra.mxu0 0.0
    %991 = vmatprep.subr.mxu0 0.0
    %992 = vmatpush1.msra.mxu0 0.0
    %993 = vmatprep.subr.mxu0 0.0
    %994 = vmatpush1.msra.mxu0 0.0
    %995 = vmatprep.subr.mxu0 0.0
    %996 = vmatpush1.msra.mxu0 0.0
    %997 = vmatprep.subr.mxu0 0.0
    %998 = vmatpush1.msra.mxu0 0.0
    %999 = vmatprep.subr.mxu0 0.0
    %1000 = vmatpush1.msra.mxu0 0.0
    %1001 = vmatprep.subr.mxu0 0.0
    %1002 = vmatpush1.msra.mxu0 0.0
    %1003 = vmatprep.subr.mxu0 0.0
    %1004 = vmatpush1.msra.mxu0 0.0
    %1005 = vmatprep.subr.mxu0 0.0
    %1006 = vmatpush1.msra.mxu0 0.0
    %1007 = vmatprep.subr.mxu0 0.0
    %1008 = vmatpush1.msra.mxu0 0.0
    %1009 = vmatprep.subr.mxu0 0.0
    %1010 = vmatpush1.msra.mxu0 0.0
    %1011 = vmatprep.subr.mxu0 0.0
    %1012 = vmatpush1.msra.mxu0 0.0
    %1013 = vmatprep.subr.mxu0 0.0
    %1014 = vmatpush1.msra.mxu0 0.0
    %1015 = vmatprep.subr.mxu0 0.0
    %1016 = vmatpush1.msra.mxu0 0.0
    %1017 = vmatprep.subr.mxu0 0.0
    %1018 = vmatpush1.msra.mxu0 0.0
    %1019 = vmatprep.mubr.f32.mxu0 0.0
    %1020 = vmatmul.mubr.f32.gmra.mrb[0].mxu0 %v953
    %v1021 = vpop.f32.mrb[0].mxu0
    %v1022 = vadd.f32 %v950, %v1021
    %v1023 = vpop.f32.mrb[0].mxu0
    %1024 = vdwg.mxu0
    %s1025 = scalar_lea.vmem [#allocation2], 32
    %v1026 = vld [vmem:[%s1025] sm:$0xff]
    %v1027 = vld [vmem:[%s1025 + $0x8] sm:$0xff]
    %v1028 = vld [vmem:[%s1025 + $0x10] sm:$0xff]
    %v1029 = vld [vmem:[%s1025 + $0x18] sm:$0xff]
    %s1030 = scalar_lea.vmem %s6, 1
    %v1031 = vld [vmem:[%s1030] sm:$0x1]
    %v1033 = vlaneseq
    %v1034 = vshrl.u32 %v1033, 7
    %v1035 = vsub.s32 0, %v1034
    %v1036 = vrot.slane %v1031, %v1035
    %1038 = vmatprep.subr.mxu0 0.0
    %1039 = vmatpush1.msra.mxu0 %v1026
    %1040 = vmatprep.subr.mxu0 0.0
    %1041 = vmatpush1.msra.mxu0 %v1027
    %1042 = vmatprep.subr.mxu0 0.0
    %1043 = vmatpush1.msra.mxu0 %v1028
    %1044 = vmatprep.subr.mxu0 0.0
    %1045 = vmatpush1.msra.mxu0 %v1029
    %1046 = vmatprep.subr.mxu0 0.0
    %1047 = vmatpush1.msra.mxu0 0.0
    %1048 = vmatprep.subr.mxu0 0.0
    %1049 = vmatpush1.msra.mxu0 0.0
    %1050 = vmatprep.subr.mxu0 0.0
    %1051 = vmatpush1.msra.mxu0 0.0
    %1052 = vmatprep.subr.mxu0 0.0
    %1053 = vmatpush1.msra.mxu0 0.0
    %1054 = vmatprep.subr.mxu0 0.0
    %1055 = vmatpush1.msra.mxu0 0.0
    %1056 = vmatprep.subr.mxu0 0.0
    %1057 = vmatpush1.msra.mxu0 0.0
    %1058 = vmatprep.subr.mxu0 0.0
    %1059 = vmatpush1.msra.mxu0 0.0
    %1060 = vmatprep.subr.mxu0 0.0
    %1061 = vmatpush1.msra.mxu0 0.0
    %1062 = vmatprep.subr.mxu0 0.0
    %1063 = vmatpush1.msra.mxu0 0.0
    %1064 = vmatprep.subr.mxu0 0.0
    %1065 = vmatpush1.msra.mxu0 0.0
    %1066 = vmatprep.subr.mxu0 0.0
    %1067 = vmatpush1.msra.mxu0 0.0
    %1068 = vmatprep.subr.mxu0 0.0
    %1069 = vmatpush1.msra.mxu0 0.0
    %1070 = vmatprep.subr.mxu0 0.0
    %1071 = vmatpush1.msra.mxu0 0.0
    %1072 = vmatprep.subr.mxu0 0.0
    %1073 = vmatpush1.msra.mxu0 0.0
    %1074 = vmatprep.subr.mxu0 0.0
    %1075 = vmatpush1.msra.mxu0 0.0
    %1076 = vmatprep.subr.mxu0 0.0
    %1077 = vmatpush1.msra.mxu0 0.0
    %1078 = vmatprep.subr.mxu0 0.0
    %1079 = vmatpush1.msra.mxu0 0.0
    %1080 = vmatprep.subr.mxu0 0.0
    %1081 = vmatpush1.msra.mxu0 0.0
    %1082 = vmatprep.subr.mxu0 0.0
    %1083 = vmatpush1.msra.mxu0 0.0
    %1084 = vmatprep.subr.mxu0 0.0
    %1085 = vmatpush1.msra.mxu0 0.0
    %1086 = vmatprep.subr.mxu0 0.0
    %1087 = vmatpush1.msra.mxu0 0.0
    %1088 = vmatprep.subr.mxu0 0.0
    %1089 = vmatpush1.msra.mxu0 0.0
    %1090 = vmatprep.subr.mxu0 0.0
    %1091 = vmatpush1.msra.mxu0 0.0
    %1092 = vmatprep.subr.mxu0 0.0
    %1093 = vmatpush1.msra.mxu0 0.0
    %1094 = vmatprep.subr.mxu0 0.0
    %1095 = vmatpush1.msra.mxu0 0.0
    %1096 = vmatprep.subr.mxu0 0.0
    %1097 = vmatpush1.msra.mxu0 0.0
    %1098 = vmatprep.subr.mxu0 0.0
    %1099 = vmatpush1.msra.mxu0 0.0
    %1100 = vmatprep.subr.mxu0 0.0
    %1101 = vmatpush1.msra.mxu0 0.0
    %1102 = vmatprep.mubr.f32.mxu0 0.0
    %1103 = vmatmul.mubr.f32.gmra.mrb[0].mxu0 %v953
    %v1104 = vpop.f32.mrb[0].mxu0
    %v1105 = vadd.f32 %v1036, %v1104
    %v1106 = vpop.f32.mrb[0].mxu0
    %1107 = vdwg.mxu0
    %s1108 = scalar_lea.vmem [#allocation5], 32
    %v1109 = vld [vmem:[%s1108] sm:$0xff]
    %v1110 = vld [vmem:[%s1108 + $0x8] sm:$0xff]
    %v1111 = vld [vmem:[%s1108 + $0x10] sm:$0xff]
    %v1112 = vld [vmem:[%s1108 + $0x18] sm:$0xff]
    %s1113 = scalar_lea.vmem %s7, 1
    %v1114 = vld [vmem:[%s1113] sm:$0x1]
    %v1116 = vlaneseq
    %v1117 = vshrl.u32 %v1116, 7
    %v1118 = vsub.s32 0, %v1117
    %v1119 = vrot.slane %v1114, %v1118
    %1121 = vmatprep.subr.mxu0 0.0
    %1122 = vmatpush1.msra.mxu0 %v1109
    %1123 = vmatprep.subr.mxu0 0.0
    %1124 = vmatpush1.msra.mxu0 %v1110
    %1125 = vmatprep.subr.mxu0 0.0
    %1126 = vmatpush1.msra.mxu0 %v1111
    %1127 = vmatprep.subr.mxu0 0.0
    %1128 = vmatpush1.msra.mxu0 %v1112
    %1129 = vmatprep.subr.mxu0 0.0
    %1130 = vmatpush1.msra.mxu0 0.0
    %1131 = vmatprep.subr.mxu0 0.0
    %1132 = vmatpush1.msra.mxu0 0.0
    %1133 = vmatprep.subr.mxu0 0.0
    %1134 = vmatpush1.msra.mxu0 0.0
    %1135 = vmatprep.subr.mxu0 0.0
    %1136 = vmatpush1.msra.mxu0 0.0
    %1137 = vmatprep.subr.mxu0 0.0
    %1138 = vmatpush1.msra.mxu0 0.0
    %1139 = vmatprep.subr.mxu0 0.0
    %1140 = vmatpush1.msra.mxu0 0.0
    %1141 = vmatprep.subr.mxu0 0.0
    %1142 = vmatpush1.msra.mxu0 0.0
    %1143 = vmatprep.subr.mxu0 0.0
    %1144 = vmatpush1.msra.mxu0 0.0
    %1145 = vmatprep.subr.mxu0 0.0
    %1146 = vmatpush1.msra.mxu0 0.0
    %1147 = vmatprep.subr.mxu0 0.0
    %1148 = vmatpush1.msra.mxu0 0.0
    %1149 = vmatprep.subr.mxu0 0.0
    %1150 = vmatpush1.msra.mxu0 0.0
    %1151 = vmatprep.subr.mxu0 0.0
    %1152 = vmatpush1.msra.mxu0 0.0
    %1153 = vmatprep.subr.mxu0 0.0
    %1154 = vmatpush1.msra.mxu0 0.0
    %1155 = vmatprep.subr.mxu0 0.0
    %1156 = vmatpush1.msra.mxu0 0.0
    %1157 = vmatprep.subr.mxu0 0.0
    %1158 = vmatpush1.msra.mxu0 0.0
    %1159 = vmatprep.subr.mxu0 0.0
    %1160 = vmatpush1.msra.mxu0 0.0
    %1161 = vmatprep.subr.mxu0 0.0
    %1162 = vmatpush1.msra.mxu0 0.0
    %1163 = vmatprep.subr.mxu0 0.0
    %1164 = vmatpush1.msra.mxu0 0.0
    %1165 = vmatprep.subr.mxu0 0.0
    %1166 = vmatpush1.msra.mxu0 0.0
    %1167 = vmatprep.subr.mxu0 0.0
    %1168 = vmatpush1.msra.mxu0 0.0
    %1169 = vmatprep.subr.mxu0 0.0
    %1170 = vmatpush1.msra.mxu0 0.0
    %1171 = vmatprep.subr.mxu0 0.0
    %1172 = vmatpush1.msra.mxu0 0.0
    %1173 = vmatprep.subr.mxu0 0.0
    %1174 = vmatpush1.msra.mxu0 0.0
    %1175 = vmatprep.subr.mxu0 0.0
    %1176 = vmatpush1.msra.mxu0 0.0
    %1177 = vmatprep.subr.mxu0 0.0
    %1178 = vmatpush1.msra.mxu0 0.0
    %1179 = vmatprep.subr.mxu0 0.0
    %1180 = vmatpush1.msra.mxu0 0.0
    %1181 = vmatprep.subr.mxu0 0.0
    %1182 = vmatpush1.msra.mxu0 0.0
    %1183 = vmatprep.subr.mxu0 0.0
    %1184 = vmatpush1.msra.mxu0 0.0
    %1185 = vmatprep.mubr.f32.mxu0 0.0
    %1186 = vmatmul.mubr.f32.gmra.mrb[0].mxu0 %v953
    %v1187 = vpop.f32.mrb[0].mxu0
    %v1188 = vadd.f32 %v1119, %v1187
    %v1189 = vpop.f32.mrb[0].mxu0
    %1190 = vdwg.mxu0
    %v1191 = vlaneseq
    %v1192 = vshrl.u32 %v1191, 7
    %v1193 = vsub.s32 0, %v1192
    %v1194 = vrot.slane %v1105, %v1193
    %v1195 = vmul.f32 %v1022, %v1194
    %v1197 = vsel %vm126, %v1195, 0
    %1199 = vmatprep.subr.mxu0 0.0
    %1200 = vmatpush1.msra.mxu0 %v104
    %1201 = vmatprep.subr.mxu0 0.0
    %1202 = vmatpush1.msra.mxu0 %v105
    %1203 = vmatprep.subr.mxu0 0.0
    %1204 = vmatpush1.msra.mxu0 %v106
    %1205 = vmatprep.subr.mxu0 0.0
    %1206 = vmatpush1.msra.mxu0 %v107
    %1207 = vmatprep.subr.mxu0 0.0
    %1208 = vmatpush1.msra.mxu0 0.0
    %1209 = vmatprep.subr.mxu0 0.0
    %1210 = vmatpush1.msra.mxu0 0.0
    %1211 = vmatprep.subr.mxu0 0.0
    %1212 = vmatpush1.msra.mxu0 0.0
    %1213 = vmatprep.subr.mxu0 0.0
    %1214 = vmatpush1.msra.mxu0 0.0
    %1215 = vmatprep.subr.mxu0 0.0
    %1216 = vmatpush1.msra.mxu0 0.0
    %1217 = vmatprep.subr.mxu0 0.0
    %1218 = vmatpush1.msra.mxu0 0.0
    %1219 = vmatprep.subr.mxu0 0.0
    %1220 = vmatpush1.msra.mxu0 0.0
    %1221 = vmatprep.subr.mxu0 0.0
    %1222 = vmatpush1.msra.mxu0 0.0
    %1223 = vmatprep.subr.mxu0 0.0
    %1224 = vmatpush1.msra.mxu0 0.0
    %1225 = vmatprep.subr.mxu0 0.0
    %1226 = vmatpush1.msra.mxu0 0.0
    %1227 = vmatprep.subr.mxu0 0.0
    %1228 = vmatpush1.msra.mxu0 0.0
    %1229 = vmatprep.subr.mxu0 0.0
    %1230 = vmatpush1.msra.mxu0 0.0
    %1231 = vmatprep.subr.mxu0 0.0
    %1232 = vmatpush1.msra.mxu0 0.0
    %1233 = vmatprep.subr.mxu0 0.0
    %1234 = vmatpush1.msra.mxu0 0.0
    %1235 = vmatprep.subr.mxu0 0.0
    %1236 = vmatpush1.msra.mxu0 0.0
    %1237 = vmatprep.subr.mxu0 0.0
    %1238 = vmatpush1.msra.mxu0 0.0
    %1239 = vmatprep.subr.mxu0 0.0
    %1240 = vmatpush1.msra.mxu0 0.0
    %1241 = vmatprep.subr.mxu0 0.0
    %1242 = vmatpush1.msra.mxu0 0.0
    %1243 = vmatprep.subr.mxu0 0.0
    %1244 = vmatpush1.msra.mxu0 0.0
    %1245 = vmatprep.subr.mxu0 0.0
    %1246 = vmatpush1.msra.mxu0 0.0
    %1247 = vmatprep.subr.mxu0 0.0
    %1248 = vmatpush1.msra.mxu0 0.0
    %1249 = vmatprep.subr.mxu0 0.0
    %1250 = vmatpush1.msra.mxu0 0.0
    %1251 = vmatprep.subr.mxu0 0.0
    %1252 = vmatpush1.msra.mxu0 0.0
    %1253 = vmatprep.subr.mxu0 0.0
    %1254 = vmatpush1.msra.mxu0 0.0
    %1255 = vmatprep.subr.mxu0 0.0
    %1256 = vmatpush1.msra.mxu0 0.0
    %1257 = vmatprep.subr.mxu0 0.0
    %1258 = vmatpush1.msra.mxu0 0.0
    %1259 = vmatprep.subr.mxu0 0.0
    %1260 = vmatpush1.msra.mxu0 0.0
    %1261 = vmatprep.subr.mxu0 0.0
    %1262 = vmatpush1.msra.mxu0 0.0
    %1263 = vmatprep.mubr.f32.mxu0 0.0
    %1264 = vmatmul.mubr.f32.gmra.mrb[0].mxu0 %v1197
    %v1265 = vpop.f32.mrb[0].mxu0
    %v1266 = vadd.f32 0.0, %v1265
    %v1267 = vpop.f32.mrb[0].mxu0
    %1268 = vdwg.mxu0
    %v1269 = vmul.f32 %v1266, 0.5
    %v1270 = vlaneseq
    %v1271 = vshrl.u32 %v1270, 7
    %v1272 = vsub.s32 1, %v1271
    %v1273 = vrot.slane %v1105, %v1272
    %v1274 = vmul.f32 %v1022, %v1273
    %v1276 = vsel %vm126, %v1274, 0
    %1278 = vmatprep.subr.mxu0 0.0
    %1279 = vmatpush1.msra.mxu0 %v104
    %1280 = vmatprep.subr.mxu0 0.0
    %1281 = vmatpush1.msra.mxu0 %v105
    %1282 = vmatprep.subr.mxu0 0.0
    %1283 = vmatpush1.msra.mxu0 %v106
    %1284 = vmatprep.subr.mxu0 0.0
    %1285 = vmatpush1.msra.mxu0 %v107
    %1286 = vmatprep.subr.mxu0 0.0
    %1287 = vmatpush1.msra.mxu0 0.0
    %1288 = vmatprep.subr.mxu0 0.0
    %1289 = vmatpush1.msra.mxu0 0.0
    %1290 = vmatprep.subr.mxu0 0.0
    %1291 = vmatpush1.msra.mxu0 0.0
    %1292 = vmatprep.subr.mxu0 0.0
    %1293 = vmatpush1.msra.mxu0 0.0
    %1294 = vmatprep.subr.mxu0 0.0
    %1295 = vmatpush1.msra.mxu0 0.0
    %1296 = vmatprep.subr.mxu0 0.0
    %1297 = vmatpush1.msra.mxu0 0.0
    %1298 = vmatprep.subr.mxu0 0.0
    %1299 = vmatpush1.msra.mxu0 0.0
    %1300 = vmatprep.subr.mxu0 0.0
    %1301 = vmatpush1.msra.mxu0 0.0
    %1302 = vmatprep.subr.mxu0 0.0
    %1303 = vmatpush1.msra.mxu0 0.0
    %1304 = vmatprep.subr.mxu0 0.0
    %1305 = vmatpush1.msra.mxu0 0.0
    %1306 = vmatprep.subr.mxu0 0.0
    %1307 = vmatpush1.msra.mxu0 0.0
    %1308 = vmatprep.subr.mxu0 0.0
    %1309 = vmatpush1.msra.mxu0 0.0
    %1310 = vmatprep.subr.mxu0 0.0
    %1311 = vmatpush1.msra.mxu0 0.0
    %1312 = vmatprep.subr.mxu0 0.0
    %1313 = vmatpush1.msra.mxu0 0.0
    %1314 = vmatprep.subr.mxu0 0.0
    %1315 = vmatpush1.msra.mxu0 0.0
    %1316 = vmatprep.subr.mxu0 0.0
    %1317 = vmatpush1.msra.mxu0 0.0
    %1318 = vmatprep.subr.mxu0 0.0
    %1319 = vmatpush1.msra.mxu0 0.0
    %1320 = vmatprep.subr.mxu0 0.0
    %1321 = vmatpush1.msra.mxu0 0.0
    %1322 = vmatprep.subr.mxu0 0.0
    %1323 = vmatpush1.msra.mxu0 0.0
    %1324 = vmatprep.subr.mxu0 0.0
    %1325 = vmatpush1.msra.mxu0 0.0
    %1326 = vmatprep.subr.mxu0 0.0
    %1327 = vmatpush1.msra.mxu0 0.0
    %1328 = vmatprep.subr.mxu0 0.0
    %1329 = vmatpush1.msra.mxu0 0.0
    %1330 = vmatprep.subr.mxu0 0.0
    %1331 = vmatpush1.msra.mxu0 0.0
    %1332 = vmatprep.subr.mxu0 0.0
    %1333 = vmatpush1.msra.mxu0 0.0
    %1334 = vmatprep.subr.mxu0 0.0
    %1335 = vmatpush1.msra.mxu0 0.0
    %1336 = vmatprep.subr.mxu0 0.0
    %1337 = vmatpush1.msra.mxu0 0.0
    %1338 = vmatprep.subr.mxu0 0.0
    %1339 = vmatpush1.msra.mxu0 0.0
    %1340 = vmatprep.subr.mxu0 0.0
    %1341 = vmatpush1.msra.mxu0 0.0
    %1342 = vmatprep.mubr.f32.mxu0 0.0
    %1343 = vmatmul.mubr.f32.gmra.mrb[0].mxu0 %v1276
    %v1344 = vpop.f32.mrb[0].mxu0
    %v1345 = vadd.f32 0.0, %v1344
    %v1346 = vpop.f32.mrb[0].mxu0
    %1347 = vdwg.mxu0
    %v1348 = vmul.f32 %v1345, 0.5
    %v1349 = vmax.f32 %v1269, %v1348
    %v1350 = vsub.f32 %v1269, %v1349
    %v1351 = vmul.f32 %v1350, 1.442695
    %v1352 = vpow.pop %v1351
    %v1353 = vsub.f32 %v1348, %v1349
    %v1354 = vmul.f32 %v1353, 1.442695
    %v1355 = vpow.pop %v1354
    %v1356 = vadd.f32 %v1352, %v1355
    %v1357 = vrcp.pop %v1356
    %v1358 = vmul.f32 1.0, %v1357
    %v1359 = vmul.f32 %v1352, %v1358
    %v1361 = vsel %vm531, %v1359, 0
    %1363 = vmatprep.subr.mxu0 0.0
    %1364 = vmatpush1.msra.mxu0 %v108
    %1365 = vmatprep.subr.mxu0 0.0
    %1366 = vmatpush1.msra.mxu0 0.0
    %1367 = vmatprep.subr.mxu0 0.0
    %1368 = vmatpush1.msra.mxu0 0.0
    %1369 = vmatprep.subr.mxu0 0.0
    %1370 = vmatpush1.msra.mxu0 0.0
    %1371 = vmatprep.subr.mxu0 0.0
    %1372 = vmatpush1.msra.mxu0 0.0
    %1373 = vmatprep.subr.mxu0 0.0
    %1374 = vmatpush1.msra.mxu0 0.0
    %1375 = vmatprep.subr.mxu0 0.0
    %1376 = vmatpush1.msra.mxu0 0.0
    %1377 = vmatprep.subr.mxu0 0.0
    %1378 = vmatpush1.msra.mxu0 0.0
    %1379 = vmatprep.subr.mxu0 0.0
    %1380 = vmatpush1.msra.mxu0 0.0
    %1381 = vmatprep.subr.mxu0 0.0
    %1382 = vmatpush1.msra.mxu0 0.0
    %1383 = vmatprep.subr.mxu0 0.0
    %1384 = vmatpush1.msra.mxu0 0.0
    %1385 = vmatprep.subr.mxu0 0.0
    %1386 = vmatpush1.msra.mxu0 0.0
    %1387 = vmatprep.subr.mxu0 0.0
    %1388 = vmatpush1.msra.mxu0 0.0
    %1389 = vmatprep.subr.mxu0 0.0
    %1390 = vmatpush1.msra.mxu0 0.0
    %1391 = vmatprep.subr.mxu0 0.0
    %1392 = vmatpush1.msra.mxu0 0.0
    %1393 = vmatprep.subr.mxu0 0.0
    %1394 = vmatpush1.msra.mxu0 0.0
    %1395 = vmatprep.subr.mxu0 0.0
    %1396 = vmatpush1.msra.mxu0 0.0
    %1397 = vmatprep.subr.mxu0 0.0
    %1398 = vmatpush1.msra.mxu0 0.0
    %1399 = vmatprep.subr.mxu0 0.0
    %1400 = vmatpush1.msra.mxu0 0.0
    %1401 = vmatprep.subr.mxu0 0.0
    %1402 = vmatpush1.msra.mxu0 0.0
    %1403 = vmatprep.subr.mxu0 0.0
    %1404 = vmatpush1.msra.mxu0 0.0
    %1405 = vmatprep.subr.mxu0 0.0
    %1406 = vmatpush1.msra.mxu0 0.0
    %1407 = vmatprep.subr.mxu0 0.0
    %1408 = vmatpush1.msra.mxu0 0.0
    %1409 = vmatprep.subr.mxu0 0.0
    %1410 = vmatpush1.msra.mxu0 0.0
    %1411 = vmatprep.subr.mxu0 0.0
    %1412 = vmatpush1.msra.mxu0 0.0
    %1413 = vmatprep.subr.mxu0 0.0
    %1414 = vmatpush1.msra.mxu0 0.0
    %1415 = vmatprep.subr.mxu0 0.0
    %1416 = vmatpush1.msra.mxu0 0.0
    %1417 = vmatprep.subr.mxu0 0.0
    %1418 = vmatpush1.msra.mxu0 0.0
    %1419 = vmatprep.subr.mxu0 0.0
    %1420 = vmatpush1.msra.mxu0 0.0
    %1421 = vmatprep.subr.mxu0 0.0
    %1422 = vmatpush1.msra.mxu0 0.0
    %1423 = vmatprep.subr.mxu0 0.0
    %1424 = vmatpush1.msra.mxu0 0.0
    %1425 = vmatprep.subr.mxu0 0.0
    %1426 = vmatpush1.msra.mxu0 0.0
    %1427 = vmatprep.mubr.f32.mxu0 0.0
    %1428 = vmatmul.mubr.f32.gmra.mrb[0].mxu0 %v1361
    %v1429 = vpop.f32.mrb[0].mxu0
    %v1430 = vadd.f32 0.0, %v1429
    %v1431 = vpop.f32.mrb[0].mxu0
    %1432 = vdwg.mxu0
    %v1433 = vlaneseq
    %v1434 = vshrl.u32 %v1433, 7
    %v1435 = vsub.s32 0, %v1434
    %v1436 = vrot.slane %v1188, %v1435
    %v1437 = vmul.f32 %v1430, %v1436
    %v1438 = vadd.f32 %v1437, 0.0
    %v1439 = vmul.f32 %v1355, %v1358
    %v1441 = vsel %vm531, %v1439, 0
    %1443 = vmatprep.subr.mxu0 0.0
    %1444 = vmatpush1.msra.mxu0 %v108
    %1445 = vmatprep.subr.mxu0 0.0
    %1446 = vmatpush1.msra.mxu0 0.0
    %1447 = vmatprep.subr.mxu0 0.0
    %1448 = vmatpush1.msra.mxu0 0.0
    %1449 = vmatprep.subr.mxu0 0.0
    %1450 = vmatpush1.msra.mxu0 0.0
    %1451 = vmatprep.subr.mxu0 0.0
    %1452 = vmatpush1.msra.mxu0 0.0
    %1453 = vmatprep.subr.mxu0 0.0
    %1454 = vmatpush1.msra.mxu0 0.0
    %1455 = vmatprep.subr.mxu0 0.0
    %1456 = vmatpush1.msra.mxu0 0.0
    %1457 = vmatprep.subr.mxu0 0.0
    %1458 = vmatpush1.msra.mxu0 0.0
    %1459 = vmatprep.subr.mxu0 0.0
    %1460 = vmatpush1.msra.mxu0 0.0
    %1461 = vmatprep.subr.mxu0 0.0
    %1462 = vmatpush1.msra.mxu0 0.0
    %1463 = vmatprep.subr.mxu0 0.0
    %1464 = vmatpush1.msra.mxu0 0.0
    %1465 = vmatprep.subr.mxu0 0.0
    %1466 = vmatpush1.msra.mxu0 0.0
    %1467 = vmatprep.subr.mxu0 0.0
    %1468 = vmatpush1.msra.mxu0 0.0
    %1469 = vmatprep.subr.mxu0 0.0
    %1470 = vmatpush1.msra.mxu0 0.0
    %1471 = vmatprep.subr.mxu0 0.0
    %1472 = vmatpush1.msra.mxu0 0.0
    %1473 = vmatprep.subr.mxu0 0.0
    %1474 = vmatpush1.msra.mxu0 0.0
    %1475 = vmatprep.subr.mxu0 0.0
    %1476 = vmatpush1.msra.mxu0 0.0
    %1477 = vmatprep.subr.mxu0 0.0
    %1478 = vmatpush1.msra.mxu0 0.0
    %1479 = vmatprep.subr.mxu0 0.0
    %1480 = vmatpush1.msra.mxu0 0.0
    %1481 = vmatprep.subr.mxu0 0.0
    %1482 = vmatpush1.msra.mxu0 0.0
    %1483 = vmatprep.subr.mxu0 0.0
    %1484 = vmatpush1.msra.mxu0 0.0
    %1485 = vmatprep.subr.mxu0 0.0
    %1486 = vmatpush1.msra.mxu0 0.0
    %1487 = vmatprep.subr.mxu0 0.0
    %1488 = vmatpush1.msra.mxu0 0.0
    %1489 = vmatprep.subr.mxu0 0.0
    %1490 = vmatpush1.msra.mxu0 0.0
    %1491 = vmatprep.subr.mxu0 0.0
    %1492 = vmatpush1.msra.mxu0 0.0
    %1493 = vmatprep.subr.mxu0 0.0
    %1494 = vmatpush1.msra.mxu0 0.0
    %1495 = vmatprep.subr.mxu0 0.0
    %1496 = vmatpush1.msra.mxu0 0.0
    %1497 = vmatprep.subr.mxu0 0.0
    %1498 = vmatpush1.msra.mxu0 0.0
    %1499 = vmatprep.subr.mxu0 0.0
    %1500 = vmatpush1.msra.mxu0 0.0
    %1501 = vmatprep.subr.mxu0 0.0
    %1502 = vmatpush1.msra.mxu0 0.0
    %1503 = vmatprep.subr.mxu0 0.0
    %1504 = vmatpush1.msra.mxu0 0.0
    %1505 = vmatprep.subr.mxu0 0.0
    %1506 = vmatpush1.msra.mxu0 0.0
    %1507 = vmatprep.mubr.f32.mxu0 0.0
    %1508 = vmatmul.mubr.f32.gmra.mrb[0].mxu0 %v1441
    %v1509 = vpop.f32.mrb[0].mxu0
    %v1510 = vadd.f32 0.0, %v1509
    %v1511 = vpop.f32.mrb[0].mxu0
    %1512 = vdwg.mxu0
    %v1513 = vlaneseq
    %v1514 = vshrl.u32 %v1513, 7
    %v1515 = vsub.s32 1, %v1514
    %v1516 = vrot.slane %v1188, %v1515
    %v1517 = vmul.f32 %v1510, %v1516
    %v1518 = vadd.f32 %v1438, %v1517
    %s1519 = scalar_lea.vmem [#allocation7], 32
    %v1520 = vld [vmem:[%s1519] sm:$0xff]
    %v1521 = vld [vmem:[%s1519 + $0x8] sm:$0xff]
    %v1522 = vld [vmem:[%s1519 + $0x10] sm:$0xff]
    %v1523 = vld [vmem:[%s1519 + $0x18] sm:$0xff]
    %s1524 = scalar_lea.vmem %s8, 1
    %v1525 = vld [vmem:[%s1524] sm:$0x1]
    %v1527 = vlaneseq
    %v1528 = vshrl.u32 %v1527, 7
    %v1529 = vsub.s32 0, %v1528
    %v1530 = vrot.slane %v1525, %v1529
    %v1533 = vsel %vm126, %v1518, 0
    %1535 = vmatprep.subr.mxu0 0.0
    %1536 = vmatpush1.msra.mxu0 %v1520
    %1537 = vmatprep.subr.mxu0 0.0
    %1538 = vmatpush1.msra.mxu0 %v1521
    %1539 = vmatprep.subr.mxu0 0.0
    %1540 = vmatpush1.msra.mxu0 %v1522
    %1541 = vmatprep.subr.mxu0 0.0
    %1542 = vmatpush1.msra.mxu0 %v1523
    %1543 = vmatprep.subr.mxu0 0.0
    %1544 = vmatpush1.msra.mxu0 0.0
    %1545 = vmatprep.subr.mxu0 0.0
    %1546 = vmatpush1.msra.mxu0 0.0
    %1547 = vmatprep.subr.mxu0 0.0
    %1548 = vmatpush1.msra.mxu0 0.0
    %1549 = vmatprep.subr.mxu0 0.0
    %1550 = vmatpush1.msra.mxu0 0.0
    %1551 = vmatprep.subr.mxu0 0.0
    %1552 = vmatpush1.msra.mxu0 0.0
    %1553 = vmatprep.subr.mxu0 0.0
    %1554 = vmatpush1.msra.mxu0 0.0
    %1555 = vmatprep.subr.mxu0 0.0
    %1556 = vmatpush1.msra.mxu0 0.0
    %1557 = vmatprep.subr.mxu0 0.0
    %1558 = vmatpush1.msra.mxu0 0.0
    %1559 = vmatprep.subr.mxu0 0.0
    %1560 = vmatpush1.msra.mxu0 0.0
    %1561 = vmatprep.subr.mxu0 0.0
    %1562 = vmatpush1.msra.mxu0 0.0
    %1563 = vmatprep.subr.mxu0 0.0
    %1564 = vmatpush1.msra.mxu0 0.0
    %1565 = vmatprep.subr.mxu0 0.0
    %1566 = vmatpush1.msra.mxu0 0.0
    %1567 = vmatprep.subr.mxu0 0.0
    %1568 = vmatpush1.msra.mxu0 0.0
    %1569 = vmatprep.subr.mxu0 0.0
    %1570 = vmatpush1.msra.mxu0 0.0
    %1571 = vmatprep.subr.mxu0 0.0
    %1572 = vmatpush1.msra.mxu0 0.0
    %1573 = vmatprep.subr.mxu0 0.0
    %1574 = vmatpush1.msra.mxu0 0.0
    %1575 = vmatprep.subr.mxu0 0.0
    %1576 = vmatpush1.msra.mxu0 0.0
    %1577 = vmatprep.subr.mxu0 0.0
    %1578 = vmatpush1.msra.mxu0 0.0
    %1579 = vmatprep.subr.mxu0 0.0
    %1580 = vmatpush1.msra.mxu0 0.0
    %1581 = vmatprep.subr.mxu0 0.0
    %1582 = vmatpush1.msra.mxu0 0.0
    %1583 = vmatprep.subr.mxu0 0.0
    %1584 = vmatpush1.msra.mxu0 0.0
    %1585 = vmatprep.subr.mxu0 0.0
    %1586 = vmatpush1.msra.mxu0 0.0
    %1587 = vmatprep.subr.mxu0 0.0
    %1588 = vmatpush1.msra.mxu0 0.0
    %1589 = vmatprep.subr.mxu0 0.0
    %1590 = vmatpush1.msra.mxu0 0.0
    %1591 = vmatprep.subr.mxu0 0.0
    %1592 = vmatpush1.msra.mxu0 0.0
    %1593 = vmatprep.subr.mxu0 0.0
    %1594 = vmatpush1.msra.mxu0 0.0
    %1595 = vmatprep.subr.mxu0 0.0
    %1596 = vmatpush1.msra.mxu0 0.0
    %1597 = vmatprep.subr.mxu0 0.0
    %1598 = vmatpush1.msra.mxu0 0.0
    %1599 = vmatprep.mubr.f32.mxu0 0.0
    %1600 = vmatmul.mubr.f32.gmra.mrb[0].mxu0 %v1533
    %v1601 = vpop.f32.mrb[0].mxu0
    %v1602 = vadd.f32 %v1530, %v1601
    %v1603 = vpop.f32.mrb[0].mxu0
    %1604 = vdwg.mxu0
    %v1606 = vsel %vm126, %v1602, 0
    %1608 = vmatprep.subr.mxu0 0.0
    %1609 = vmatpush1.msra.mxu0 %v109
    %1610 = vmatprep.subr.mxu0 0.0
    %1611 = vmatpush1.msra.mxu0 %v110
    %1612 = vmatprep.subr.mxu0 0.0
    %1613 = vmatpush1.msra.mxu0 %v111
    %1614 = vmatprep.subr.mxu0 0.0
    %1615 = vmatpush1.msra.mxu0 %v112
    %1616 = vmatprep.subr.mxu0 0.0
    %1617 = vmatpush1.msra.mxu0 0.0
    %1618 = vmatprep.subr.mxu0 0.0
    %1619 = vmatpush1.msra.mxu0 0.0
    %1620 = vmatprep.subr.mxu0 0.0
    %1621 = vmatpush1.msra.mxu0 0.0
    %1622 = vmatprep.subr.mxu0 0.0
    %1623 = vmatpush1.msra.mxu0 0.0
    %1624 = vmatprep.subr.mxu0 0.0
    %1625 = vmatpush1.msra.mxu0 0.0
    %1626 = vmatprep.subr.mxu0 0.0
    %1627 = vmatpush1.msra.mxu0 0.0
    %1628 = vmatprep.subr.mxu0 0.0
    %1629 = vmatpush1.msra.mxu0 0.0
    %1630 = vmatprep.subr.mxu0 0.0
    %1631 = vmatpush1.msra.mxu0 0.0
    %1632 = vmatprep.subr.mxu0 0.0
    %1633 = vmatpush1.msra.mxu0 0.0
    %1634 = vmatprep.subr.mxu0 0.0
    %1635 = vmatpush1.msra.mxu0 0.0
    %1636 = vmatprep.subr.mxu0 0.0
    %1637 = vmatpush1.msra.mxu0 0.0
    %1638 = vmatprep.subr.mxu0 0.0
    %1639 = vmatpush1.msra.mxu0 0.0
    %1640 = vmatprep.subr.mxu0 0.0
    %1641 = vmatpush1.msra.mxu0 0.0
    %1642 = vmatprep.subr.mxu0 0.0
    %1643 = vmatpush1.msra.mxu0 0.0
    %1644 = vmatprep.subr.mxu0 0.0
    %1645 = vmatpush1.msra.mxu0 0.0
    %1646 = vmatprep.subr.mxu0 0.0
    %1647 = vmatpush1.msra.mxu0 0.0
    %1648 = vmatprep.subr.mxu0 0.0
    %1649 = vmatpush1.msra.mxu0 0.0
    %1650 = vmatprep.subr.mxu0 0.0
    %1651 = vmatpush1.msra.mxu0 0.0
    %1652 = vmatprep.subr.mxu0 0.0
    %1653 = vmatpush1.msra.mxu0 0.0
    %1654 = vmatprep.subr.mxu0 0.0
    %1655 = vmatpush1.msra.mxu0 0.0
    %1656 = vmatprep.subr.mxu0 0.0
    %1657 = vmatpush1.msra.mxu0 0.0
    %1658 = vmatprep.subr.mxu0 0.0
    %1659 = vmatpush1.msra.mxu0 0.0
    %1660 = vmatprep.subr.mxu0 0.0
    %1661 = vmatpush1.msra.mxu0 0.0
    %1662 = vmatprep.subr.mxu0 0.0
    %1663 = vmatpush1.msra.mxu0 0.0
    %1664 = vmatprep.subr.mxu0 0.0
    %1665 = vmatpush1.msra.mxu0 0.0
    %1666 = vmatprep.subr.mxu0 0.0
    %1667 = vmatpush1.msra.mxu0 0.0
    %1668 = vmatprep.subr.mxu0 0.0
    %1669 = vmatpush1.msra.mxu0 0.0
    %1670 = vmatprep.subr.mxu0 0.0
    %1671 = vmatpush1.msra.mxu0 0.0
    %1672 = vmatprep.mubr.f32.mxu0 0.0
    %1673 = vmatmul.mubr.f32.gmra.mrb[0].mxu0 %v1606
    %v1674 = vpop.f32.mrb[0].mxu0
    %v1675 = vadd.f32 0.0, %v1674
    %v1676 = vpop.f32.mrb[0].mxu0
    %1677 = vdwg.mxu0
    %v1678 = vsub.f32 %v1602, %v1675
    %v1679 = vmul.f32 %v1678, %v1678
    %v1681 = vsel %vm126, %v1679, 0
    %1683 = vmatprep.subr.mxu0 0.0
    %1684 = vmatpush1.msra.mxu0 %v109
    %1685 = vmatprep.subr.mxu0 0.0
    %1686 = vmatpush1.msra.mxu0 %v110
    %1687 = vmatprep.subr.mxu0 0.0
    %1688 = vmatpush1.msra.mxu0 %v111
    %1689 = vmatprep.subr.mxu0 0.0
    %1690 = vmatpush1.msra.mxu0 %v112
    %1691 = vmatprep.subr.mxu0 0.0
    %1692 = vmatpush1.msra.mxu0 0.0
    %1693 = vmatprep.subr.mxu0 0.0
    %1694 = vmatpush1.msra.mxu0 0.0
    %1695 = vmatprep.subr.mxu0 0.0
    %1696 = vmatpush1.msra.mxu0 0.0
    %1697 = vmatprep.subr.mxu0 0.0
    %1698 = vmatpush1.msra.mxu0 0.0
    %1699 = vmatprep.subr.mxu0 0.0
    %1700 = vmatpush1.msra.mxu0 0.0
    %1701 = vmatprep.subr.mxu0 0.0
    %1702 = vmatpush1.msra.mxu0 0.0
    %1703 = vmatprep.subr.mxu0 0.0
    %1704 = vmatpush1.msra.mxu0 0.0
    %1705 = vmatprep.subr.mxu0 0.0
    %1706 = vmatpush1.msra.mxu0 0.0
    %1707 = vmatprep.subr.mxu0 0.0
    %1708 = vmatpush1.msra.mxu0 0.0
    %1709 = vmatprep.subr.mxu0 0.0
    %1710 = vmatpush1.msra.mxu0 0.0
    %1711 = vmatprep.subr.mxu0 0.0
    %1712 = vmatpush1.msra.mxu0 0.0
    %1713 = vmatprep.subr.mxu0 0.0
    %1714 = vmatpush1.msra.mxu0 0.0
    %1715 = vmatprep.subr.mxu0 0.0
    %1716 = vmatpush1.msra.mxu0 0.0
    %1717 = vmatprep.subr.mxu0 0.0
    %1718 = vmatpush1.msra.mxu0 0.0
    %1719 = vmatprep.subr.mxu0 0.0
    %1720 = vmatpush1.msra.mxu0 0.0
    %1721 = vmatprep.subr.mxu0 0.0
    %1722 = vmatpush1.msra.mxu0 0.0
    %1723 = vmatprep.subr.mxu0 0.0
    %1724 = vmatpush1.msra.mxu0 0.0
    %1725 = vmatprep.subr.mxu0 0.0
    %1726 = vmatpush1.msra.mxu0 0.0
    %1727 = vmatprep.subr.mxu0 0.0
    %1728 = vmatpush1.msra.mxu0 0.0
    %1729 = vmatprep.subr.mxu0 0.0
    %1730 = vmatpush1.msra.mxu0 0.0
    %1731 = vmatprep.subr.mxu0 0.0
    %1732 = vmatpush1.msra.mxu0 0.0
    %1733 = vmatprep.subr.mxu0 0.0
    %1734 = vmatpush1.msra.mxu0 0.0
    %1735 = vmatprep.subr.mxu0 0.0
    %1736 = vmatpush1.msra.mxu0 0.0
    %1737 = vmatprep.subr.mxu0 0.0
    %1738 = vmatpush1.msra.mxu0 0.0
    %1739 = vmatprep.subr.mxu0 0.0
    %1740 = vmatpush1.msra.mxu0 0.0
    %1741 = vmatprep.subr.mxu0 0.0
    %1742 = vmatpush1.msra.mxu0 0.0
    %1743 = vmatprep.subr.mxu0 0.0
    %1744 = vmatpush1.msra.mxu0 0.0
    %1745 = vmatprep.subr.mxu0 0.0
    %1746 = vmatpush1.msra.mxu0 0.0
    %1747 = vmatprep.mubr.f32.mxu0 0.0
    %1748 = vmatmul.mubr.f32.gmra.mrb[0].mxu0 %v1681
    %v1749 = vpop.f32.mrb[0].mxu0
    %v1750 = vadd.f32 1e-05, %v1749
    %v1751 = vpop.f32.mrb[0].mxu0
    %1752 = vdwg.mxu0
    %v1753 = vrsqrt.pop %v1750
    %v1754 = vmul.f32 %v1678, %v1753
    %v1755 = vmul.f32 %v1754, %v929
    %v1756 = vadd.f32 %v1755, %v936
    %vm1757 = vcmask 254976
    %1758 = vst.msk [vmem:[#allocation10] sm:$0x3] %vm1757, %v1756
    // Predicated region
    $region74: #{tune_encoder_fre.1} parent=1 // pred_check
      _
    $region75: #{tune_encoder_fre.1} parent=1 // pred_check_branch
      %1760 = sbr.rel (0) target = $region77
    $region76: #{tune_encoder_fre.1} parent=1 // pred_region
      %s1762 = ssub.s32 32, 32
      %1763 = vsyncadd [#allocation4], %s1762
      %s1765 = sshll.u32 [#allocation10], 4
      %s1766 = int_to_ptr.vmem [resolvable:$true] %s1765
      %1768 = dma.vmem_to_hbm [thread:$0]  %s1766, 32, %s14, [#allocation4]
    $region77: #{tune_encoder_fre.1} parent=1 // pred_fallthru
      _
    // Predicated region
    $region78: #{tune_encoder_fre.1} parent=1 // pred_check
      _
    $region79: #{tune_encoder_fre.1} parent=1 // pred_check_branch
      %1770 = sbr.rel (0) target = $region81
    $region80: #{tune_encoder_fre.1} parent=1 // pred_region
      %1771 = dma.done [#allocation4], 32
    $region81: #{tune_encoder_fre.1} parent=1 // pred_fallthru
      _
    %1772 = vsyncpa [#allocation3], 1
    %1773 = vsyncpa [#allocation6], 1
    %1774 = vsyncpa [#allocation9], 1
    %1775 = vsyncpa [#allocation4], 1

</llo_original>
